<compile_context>
chip_gen: v6e
topology: v6e:2x2x1
jax: 0.10.0
libtpu: 0.0.40
codegen_flags: <defaults>
</compile_context>

<pallas_src>
import jax
import jax.numpy as jnp
from jax import lax
from jax.experimental import pallas as pl
from jax.experimental.pallas import tpu as pltpu

# Plain Python floats: used as literals inside the kernel (NOT traced
# constants), which fixes the "kernel captures constants" error.
_BIG = 3.0e38          # "+inf" stand-in used to mask already-selected columns
_KNN_EPS = 1e-8
_LANE = 128


def _round_up(x, m):
    return ((x + m - 1) // m) * m


def _make_decoder_kernel(n_layers, n_coords):
    """Build the kernel body for a fixed number of MLP layers / coord dims."""

    def kernel(xyz1_ref, xyz2t_ref, p1_ref, p2_ref, *rest):
        # rest = (w0a, w0b, b0, w1, b1, ..., w_{L-1}, b_{L-1}, o_ref)
        o_ref = rest[-1]
        w0a_ref, w0b_ref, b0_ref = rest[0], rest[1], rest[2]
        tail = rest[3:-1]

        xyz1 = xyz1_ref[...]          # [tn, C] f32
        xyz2t = xyz2t_ref[...]        # [C,  S] f32 (pre-transposed in wrapper)

        # ---- pairwise squared distances, pure VPU (no MXU, no XLU transpose)
        # d2[i, j] = sum_c (xyz1[i, c] - xyz2[j, c])^2
        d2 = None
        for c in range(n_coords):
            diff = xyz1[:, c:c + 1] - xyz2t[c:c + 1, :]            # [tn, S]
            sq = diff * diff
            d2 = sq if d2 is None else d2 + sq

        num_src = d2.shape[-1]
        col = lax.broadcasted_iota(jnp.int32, d2.shape, 1)         # [tn, S]

        # ---- 3-NN inverse-distance weights as a sparse row matrix A [tn, S]
        # Exact f32 divides (no approx reciprocal); ties broken to the lowest
        # column index (matches lax.top_k / torch.sort behaviour).
        dist = d2
        A = jnp.zeros_like(d2)
        for _ in range(3):
            dmin = jnp.min(dist, axis=-1, keepdims=True)           # [tn, 1]
            sel = jnp.min(jnp.where(dist == dmin, col, num_src),
                          axis=-1, keepdims=True)                  # first argmin
            onehot = col == sel
            w = 1.0 / (dmin + _KNN_EPS)
            A = jnp.where(onehot, w, A)
            dist = jnp.where(onehot, _BIG, dist)
        A = A / jnp.sum(A, axis=-1, keepdims=True)

        # ---- interpolated features: A @ points2 (MXU, bf16 in / f32 acc)
        interp = jnp.dot(A.astype(jnp.bfloat16), p2_ref[...],
                         preferred_element_type=jnp.float32)        # [tn, D2]

        # ---- layer 0: relu(concat(points1, interp) @ W0 + b0), concat folded
        h = (jnp.dot(p1_ref[...], w0a_ref[...],
                     preferred_element_type=jnp.float32)
             + jnp.dot(interp.astype(jnp.bfloat16), w0b_ref[...],
                       preferred_element_type=jnp.float32)
             + b0_ref[...])
        h = jnp.maximum(h, 0.0)

        # ---- remaining MLP layers (widths lane-padded to multiples of 128)
        for li in range(n_layers - 1):
            w_ref = tail[2 * li]
            b_ref = tail[2 * li + 1]
            h = jnp.dot(h.astype(jnp.bfloat16), w_ref[...],
                        preferred_element_type=jnp.float32) + b_ref[...]
            h = jnp.maximum(h, 0.0)

        o_ref[...] = h.astype(o_ref.dtype)

    return kernel


def _vmem_limit_bytes():
    """Generation-aware VMEM budget: ~3/4 of physical, capped at 96 MiB
    (-> 48 MiB on v7x's 64 MiB, 96 MiB on v5e/v6e's 128 MiB)."""
    try:
        cap = int(pltpu.get_tpu_info().vmem_capacity_bytes)
    except Exception:
        cap = 64 * 1024 * 1024
    return min((cap * 3) // 4, 96 * 1024 * 1024)


def decoder_block(xyz1, xyz2, points1, points2, params, *, tile_n=1024,
                  bn_eps=1e-5, out_dtype=jnp.bfloat16):
    """DecoderBlock forward (eval-mode BatchNorm folded into the 1x1 convs).

    xyz1:    [B, N, C]  query positions
    xyz2:    [B, S, C]  support positions
    points1: [B, N, D1] query features
    points2: [B, S, D2] support features
    params:  list of per-layer dicts with keys
             'w' [H_out, H_in], 'b' [H_out]             (Conv1d kernel-size-1)
             'gamma','beta','mean','var' [H_out]        (BatchNorm1d, eval)
    returns  [B, N, D_out[-1]] in out_dtype (default bf16)
    """
    # TODO(synk): the S == 1 fast path (interpolated = points2.repeat) and the
    # points1 is None path of the PyTorch module are not implemented in the
    # kernel; only the general decoder path (S >= 3, points1 present) is.
    B, N, C = xyz1.shape
    _, S, _ = xyz2.shape
    D1 = points1.shape[-1]
    D2 = points2.shape[-1]
    n_layers = len(params)
    assert n_layers >= 1
    assert S >= 3, "kernel implements the k=3 NN path"

    # Big tiles amortize the ~0.35 us/step pipeline overhead, but keep enough
    # grid steps on the parallel axes that both v7x TensorCores get work.
    tile_n = min(tile_n, N)
    assert N % tile_n == 0, "N must be a multiple of tile_n"
    while (B * (N // tile_n) < 8 and tile_n >= 256 and tile_n % 2 == 0
           and N % (tile_n // 2) == 0):
        tile_n //= 2

    # Fold BatchNorm (eval mode) into the 1x1-conv weights / biases,
    # pre-transpose to [H_in, H_out], lane-pad intermediate widths to a
    # multiple of 128.  Padded channels have zero weight + zero bias, so
    # ReLU keeps them at 0 and the next layer's zero rows ignore them.
    folded = []
    in_width = D1 + D2
    for li, p in enumerate(params):
        h_out = p["w"].shape[0]
        scale = p["gamma"] / jnp.sqrt(p["var"] + bn_eps)         # [H_out]
        w_t = (p["w"] * scale[:, None]).T                        # [H_in, H_out]
        bias = (p["b"] - p["mean"]) * scale + p["beta"]          # [H_out]
        pad_in = in_width - w_t.shape[0]
        if pad_in:
            w_t = jnp.pad(w_t, ((0, pad_in), (0, 0)))
        out_width = h_out if li == n_layers - 1 else _round_up(h_out, _LANE)
        pad_out = out_width - h_out
        if pad_out:
            w_t = jnp.pad(w_t, ((0, 0), (0, pad_out)))
            bias = jnp.pad(bias, (0, pad_out))
        folded.append((w_t.astype(jnp.bfloat16),
                       bias.reshape(1, -1).astype(jnp.float32)))
        in_width = out_width

    w0_t, b0 = folded[0]
    w0a = w0_t[:D1]          # acts on points1
    w0b = w0_t[D1:]          # acts on the interpolated features
    h_last = folded[-1][0].shape[-1]

    xyz2_t = jnp.swapaxes(xyz2, -1, -2)                          # [B, C, S]
    operands = [xyz1.astype(jnp.float32), xyz2_t.astype(jnp.float32),
                points1.astype(jnp.bfloat16), points2.astype(jnp.bfloat16),
                w0a, w0b, b0]
    for w_t, bias in folded[1:]:
        operands += [w_t, bias]

    in_specs = [
        pl.BlockSpec((pl.Squeezed(), tile_n, C), lambda b_, i: (b_, i, 0)),
        pl.BlockSpec((pl.Squeezed(), C, S), lambda b_, i: (b_, 0, 0)),
        pl.BlockSpec((pl.Squeezed(), tile_n, D1), lambda b_, i: (b_, i, 0)),
        pl.BlockSpec((pl.Squeezed(), S, D2), lambda b_, i: (b_, 0, 0)),
    ]
    # Grid-invariant weight / bias blocks (constant index_map).
    # TODO(synk): single-buffer these (pipeline_mode=pl.Buffered(1)) once the
    # installed Pallas version accepts it; at production sizes the doubled
    # copies of invariant operands pinch v7x's 64 MiB VMEM.
    for arr in operands[4:]:
        in_specs.append(pl.BlockSpec(arr.shape, lambda b_, i: (0, 0)))

    out_specs = pl.BlockSpec((pl.Squeezed(), tile_n, h_last),
                             lambda b_, i: (b_, i, 0))

    # Advisory cost estimate for XLA's scheduler.
    hidden = [f[0].shape[-1] for f in folded]
    flops = 3 * B * N * S * C            # VPU distance computation
    flops += 2 * B * N * S * D2          # interpolation matmul
    last = D1 + D2
    for h in hidden:
        flops += 2 * B * N * last * h
        last = h
    bytes_accessed = sum(int(x.size) * x.dtype.itemsize for x in operands)
    bytes_accessed += B * N * h_last * jnp.dtype(out_dtype).itemsize
    cost = pl.CostEstimate(flops=int(flops),
                           transcendentals=int(4 * B * N),
                           bytes_accessed=int(bytes_accessed))

    return pl.pallas_call(
        _make_decoder_kernel(n_layers, C),
        out_shape=jax.ShapeDtypeStruct((B, N, h_last), out_dtype),
        grid_spec=pltpu.PrefetchScalarGridSpec(
            num_scalar_prefetch=0,
            grid=(B, N // tile_n),
            in_specs=in_specs,
            out_specs=out_specs,
        ),
        compiler_params=pltpu.CompilerParams(
            dimension_semantics=("parallel", "parallel"),
            vmem_limit_bytes=_vmem_limit_bytes(),
        ),
        cost_estimate=cost,
    )(*operands)


def decoder_block_ref(xyz1, xyz2, points1, points2, params, bn_eps=1e-5):
    """Pure-JAX f32 reference matching the PyTorch forward (eval-mode BN)."""
    d2 = jnp.sum((xyz1[:, :, None, :] - xyz2[:, None, :, :]) ** 2, axis=-1)
    neg_d, idx = lax.top_k(-d2, 3)                      # 3 smallest distances
    dists = -neg_d
    recip = 1.0 / (dists + 1e-8)
    weight = recip / jnp.sum(recip, axis=-1, keepdims=True)
    gathered = jax.vmap(lambda p, i: p[i])(points2, idx)     # [B, N, 3, D2]
    interp = jnp.sum(gathered * weight[..., None], axis=2)   # [B, N, D2]
    h = jnp.concatenate([points1, interp], axis=-1)
    for p in params:
        y = jnp.einsum("bnc,oc->bno", h, p["w"]) + p["b"]
        y = p["gamma"] * (y - p["mean"]) / jnp.sqrt(p["var"] + bn_eps) + p["beta"]
        h = jnp.maximum(y, 0.0)
    return h


if __name__ == "__main__":
    # Small shapes consistent with the module: [B, N, 3] / [B, S, 3] coords,
    # [B, N, D1] / [B, S, D2] features, MLP widths D_out.
    B, N, S, C = 2, 256, 64, 3
    D1, D2 = 32, 32
    D_out = (64, 128)

    key = jax.random.PRNGKey(0)
    keys = jax.random.split(key, 4 + 6 * len(D_out))
    xyz1 = jax.random.normal(keys[0], (B, N, C), jnp.float32)
    xyz2 = jax.random.normal(keys[1], (B, S, C), jnp.float32)
    points1 = jax.random.normal(keys[2], (B, N, D1), jnp.float32)
    points2 = jax.random.normal(keys[3], (B, S, D2), jnp.float32)

    params = []
    last = D1 + D2
    ki = 4
    for h in D_out:
        params.append(dict(
            w=0.1 * jax.random.normal(keys[ki + 0], (h, last), jnp.float32),
            b=0.1 * jax.random.normal(keys[ki + 1], (h,), jnp.float32),
            gamma=1.0 + 0.1 * jax.random.normal(keys[ki + 2], (h,), jnp.float32),
            beta=0.1 * jax.random.normal(keys[ki + 3], (h,), jnp.float32),
            mean=0.1 * jax.random.normal(keys[ki + 4], (h,), jnp.float32),
            var=0.5 + jax.nn.softplus(
                jax.random.normal(keys[ki + 5], (h,), jnp.float32)),
        ))
        ki += 6
        last = h

    out = decoder_block(xyz1, xyz2, points1, points2, params)
    out = jax.block_until_ready(out)

    ref = decoder_block_ref(xyz1, xyz2, points1, points2, params)
    assert out.shape == (B, N, D_out[-1])
    out_f32 = out.astype(jnp.float32)
    max_err = jnp.max(jnp.abs(out_f32 - ref))
    assert jnp.allclose(out_f32, ref, atol=5e-2, rtol=5e-2), (
        f"mismatch vs reference, max abs err={max_err}")

    print("KERNEL_OK")
</pallas_src>

<mosaic_0001>
module attributes {stable_mosaic.version = 11 : i64} {
  func.func @kernel(%arg0: i32, %arg1: i32, %arg2: memref<1x128x3xf32, #tpu.memory_space<vmem>>, %arg3: memref<1x3x64xf32, #tpu.memory_space<vmem>>, %arg4: memref<1x128x32xbf16, #tpu.memory_space<vmem>>, %arg5: memref<1x64x32xbf16, #tpu.memory_space<vmem>>, %arg6: memref<32x128xbf16, #tpu.memory_space<vmem>>, %arg7: memref<32x128xbf16, #tpu.memory_space<vmem>>, %arg8: memref<1x128xf32, #tpu.memory_space<vmem>>, %arg9: memref<128x128xbf16, #tpu.memory_space<vmem>>, %arg10: memref<1x128xf32, #tpu.memory_space<vmem>>, %arg11: memref<1x128x128xbf16, #tpu.memory_space<vmem>>) attributes {dimension_semantics = [#tpu.dimension_semantics<parallel>, #tpu.dimension_semantics<parallel>], iteration_bounds = array<i64: 2, 2>, scalar_prefetch = 0 : i64, scratch_operands = 0 : i64, tpu.core_type = #tpu.core_type<tc>, window_params = [{transform_indices = @transform_0, window_bounds = array<i64: 1, 128, 3>}, {transform_indices = @transform_1, window_bounds = array<i64: 1, 3, 64>}, {transform_indices = @transform_2, window_bounds = array<i64: 1, 128, 32>}, {transform_indices = @transform_3, window_bounds = array<i64: 1, 64, 32>}, {pipeline_mode = #tpu.pipeline_mode<synchronous>, transform_indices = @transform_4, window_bounds = array<i64: 32, 128>}, {pipeline_mode = #tpu.pipeline_mode<synchronous>, transform_indices = @transform_5, window_bounds = array<i64: 32, 128>}, {pipeline_mode = #tpu.pipeline_mode<synchronous>, transform_indices = @transform_6, window_bounds = array<i64: 1, 128>}, {pipeline_mode = #tpu.pipeline_mode<synchronous>, transform_indices = @transform_7, window_bounds = array<i64: 128, 128>}, {pipeline_mode = #tpu.pipeline_mode<synchronous>, transform_indices = @transform_8, window_bounds = array<i64: 1, 128>}, {transform_indices = @transform_9, window_bounds = array<i64: 1, 128, 128>}]} {
    %c0 = arith.constant 0 : index
    %c0_0 = arith.constant 0 : index
    %c0_1 = arith.constant 0 : index
    %0 = vector.load %arg2[%c0, %c0_0, %c0_1] : memref<1x128x3xf32, #tpu.memory_space<vmem>>, vector<1x128x3xf32>
    %1 = vector.shape_cast %0 : vector<1x128x3xf32> to vector<128x3xf32>
    %c0_2 = arith.constant 0 : index
    %c0_3 = arith.constant 0 : index
    %c0_4 = arith.constant 0 : index
    %2 = vector.load %arg3[%c0_2, %c0_3, %c0_4] : memref<1x3x64xf32, #tpu.memory_space<vmem>>, vector<1x3x64xf32>
    %3 = vector.shape_cast %2 : vector<1x3x64xf32> to vector<3x64xf32>
    %4 = vector.extract_strided_slice %1 {offsets = [0, 0], sizes = [128, 1], strides = [1, 1]} : vector<128x3xf32> to vector<128x1xf32>
    %5 = vector.extract_strided_slice %3 {offsets = [0, 0], sizes = [1, 64], strides = [1, 1]} : vector<3x64xf32> to vector<1x64xf32>
    %6 = vector.broadcast %4 : vector<128x1xf32> to vector<128x64xf32>
    %7 = vector.broadcast %5 : vector<1x64xf32> to vector<128x64xf32>
    %8 = arith.subf %6, %7 : vector<128x64xf32>
    %9 = arith.mulf %8, %8 : vector<128x64xf32>
    %10 = vector.extract_strided_slice %1 {offsets = [0, 1], sizes = [128, 1], strides = [1, 1]} : vector<128x3xf32> to vector<128x1xf32>
    %11 = vector.extract_strided_slice %3 {offsets = [1, 0], sizes = [1, 64], strides = [1, 1]} : vector<3x64xf32> to vector<1x64xf32>
    %12 = vector.broadcast %10 : vector<128x1xf32> to vector<128x64xf32>
    %13 = vector.broadcast %11 : vector<1x64xf32> to vector<128x64xf32>
    %14 = arith.subf %12, %13 : vector<128x64xf32>
    %15 = arith.mulf %14, %14 : vector<128x64xf32>
    %16 = arith.addf %9, %15 : vector<128x64xf32>
    %17 = vector.extract_strided_slice %1 {offsets = [0, 2], sizes = [128, 1], strides = [1, 1]} : vector<128x3xf32> to vector<128x1xf32>
    %18 = vector.extract_strided_slice %3 {offsets = [2, 0], sizes = [1, 64], strides = [1, 1]} : vector<3x64xf32> to vector<1x64xf32>
    %19 = vector.broadcast %17 : vector<128x1xf32> to vector<128x64xf32>
    %20 = vector.broadcast %18 : vector<1x64xf32> to vector<128x64xf32>
    %21 = arith.subf %19, %20 : vector<128x64xf32>
    %22 = arith.mulf %21, %21 : vector<128x64xf32>
    %23 = arith.addf %16, %22 : vector<128x64xf32>
    %24 = tpu.iota {dimensions = array<i32: 1>} : vector<128x64xi32>
    %cst = arith.constant 0.000000e+00 : f32
    %25 = vector.broadcast %cst : f32 to vector<128x64xf32>
    %cst_5 = arith.constant dense<0x7F800000> : vector<128xf32>
    %26 = vector.multi_reduction <minimumf>, %23, %cst_5 [1] : vector<128x64xf32> to vector<128xf32>
    %27 = vector.shape_cast %26 : vector<128xf32> to vector<128x1xf32>
    %28 = vector.broadcast %27 : vector<128x1xf32> to vector<128x64xf32>
    %29 = arith.cmpf oeq, %23, %28 : vector<128x64xf32>
    %c64_i32 = arith.constant 64 : i32
    %30 = vector.broadcast %c64_i32 : i32 to vector<128x64xi32>
    %31 = arith.select %29, %24, %30 : vector<128x64xi1>, vector<128x64xi32>
    %cst_6 = arith.constant dense<2147483647> : vector<128xi32>
    %32 = vector.multi_reduction <minsi>, %31, %cst_6 [1] : vector<128x64xi32> to vector<128xi32>
    %33 = vector.shape_cast %32 : vector<128xi32> to vector<128x1xi32>
    %34 = vector.broadcast %33 : vector<128x1xi32> to vector<128x64xi32>
    %35 = arith.cmpi eq, %24, %34 : vector<128x64xi32>
    %cst_7 = arith.constant 9.99999993E-9 : f32
    %36 = vector.broadcast %cst_7 : f32 to vector<128x1xf32>
    %37 = arith.addf %27, %36 : vector<128x1xf32>
    %cst_8 = arith.constant 1.000000e+00 : f32
    %38 = vector.broadcast %cst_8 : f32 to vector<128x1xf32>
    %39 = arith.divf %38, %37 : vector<128x1xf32>
    %40 = vector.shape_cast %39 : vector<128x1xf32> to vector<128x1xf32>
    %41 = vector.broadcast %40 : vector<128x1xf32> to vector<128x64xf32>
    %42 = arith.select %35, %41, %25 : vector<128x64xi1>, vector<128x64xf32>
    %cst_9 = arith.constant 3.000000e+38 : f32
    %43 = vector.broadcast %cst_9 : f32 to vector<128x64xf32>
    %44 = arith.select %35, %43, %23 : vector<128x64xi1>, vector<128x64xf32>
    %cst_10 = arith.constant dense<0x7F800000> : vector<128xf32>
    %45 = vector.multi_reduction <minimumf>, %44, %cst_10 [1] : vector<128x64xf32> to vector<128xf32>
    %46 = vector.shape_cast %45 : vector<128xf32> to vector<128x1xf32>
    %47 = vector.broadcast %46 : vector<128x1xf32> to vector<128x64xf32>
    %48 = arith.cmpf oeq, %44, %47 : vector<128x64xf32>
    %c64_i32_11 = arith.constant 64 : i32
    %49 = vector.broadcast %c64_i32_11 : i32 to vector<128x64xi32>
    %50 = arith.select %48, %24, %49 : vector<128x64xi1>, vector<128x64xi32>
    %cst_12 = arith.constant dense<2147483647> : vector<128xi32>
    %51 = vector.multi_reduction <minsi>, %50, %cst_12 [1] : vector<128x64xi32> to vector<128xi32>
    %52 = vector.shape_cast %51 : vector<128xi32> to vector<128x1xi32>
    %53 = vector.broadcast %52 : vector<128x1xi32> to vector<128x64xi32>
    %54 = arith.cmpi eq, %24, %53 : vector<128x64xi32>
    %cst_13 = arith.constant 9.99999993E-9 : f32
    %55 = vector.broadcast %cst_13 : f32 to vector<128x1xf32>
    %56 = arith.addf %46, %55 : vector<128x1xf32>
    %cst_14 = arith.constant 1.000000e+00 : f32
    %57 = vector.broadcast %cst_14 : f32 to vector<128x1xf32>
    %58 = arith.divf %57, %56 : vector<128x1xf32>
    %59 = vector.shape_cast %58 : vector<128x1xf32> to vector<128x1xf32>
    %60 = vector.broadcast %59 : vector<128x1xf32> to vector<128x64xf32>
    %61 = arith.select %54, %60, %42 : vector<128x64xi1>, vector<128x64xf32>
    %cst_15 = arith.constant 3.000000e+38 : f32
    %62 = vector.broadcast %cst_15 : f32 to vector<128x64xf32>
    %63 = arith.select %54, %62, %44 : vector<128x64xi1>, vector<128x64xf32>
    %cst_16 = arith.constant dense<0x7F800000> : vector<128xf32>
    %64 = vector.multi_reduction <minimumf>, %63, %cst_16 [1] : vector<128x64xf32> to vector<128xf32>
    %65 = vector.shape_cast %64 : vector<128xf32> to vector<128x1xf32>
    %66 = vector.broadcast %65 : vector<128x1xf32> to vector<128x64xf32>
    %67 = arith.cmpf oeq, %63, %66 : vector<128x64xf32>
    %c64_i32_17 = arith.constant 64 : i32
    %68 = vector.broadcast %c64_i32_17 : i32 to vector<128x64xi32>
    %69 = arith.select %67, %24, %68 : vector<128x64xi1>, vector<128x64xi32>
    %cst_18 = arith.constant dense<2147483647> : vector<128xi32>
    %70 = vector.multi_reduction <minsi>, %69, %cst_18 [1] : vector<128x64xi32> to vector<128xi32>
    %71 = vector.shape_cast %70 : vector<128xi32> to vector<128x1xi32>
    %72 = vector.broadcast %71 : vector<128x1xi32> to vector<128x64xi32>
    %73 = arith.cmpi eq, %24, %72 : vector<128x64xi32>
    %cst_19 = arith.constant 9.99999993E-9 : f32
    %74 = vector.broadcast %cst_19 : f32 to vector<128x1xf32>
    %75 = arith.addf %65, %74 : vector<128x1xf32>
    %cst_20 = arith.constant 1.000000e+00 : f32
    %76 = vector.broadcast %cst_20 : f32 to vector<128x1xf32>
    %77 = arith.divf %76, %75 : vector<128x1xf32>
    %78 = vector.shape_cast %77 : vector<128x1xf32> to vector<128x1xf32>
    %79 = vector.broadcast %78 : vector<128x1xf32> to vector<128x64xf32>
    %80 = arith.select %73, %79, %61 : vector<128x64xi1>, vector<128x64xf32>
    %cst_21 = arith.constant dense<0.000000e+00> : vector<128xf32>
    %81 = vector.multi_reduction <add>, %80, %cst_21 [1] : vector<128x64xf32> to vector<128xf32>
    %82 = vector.shape_cast %81 : vector<128xf32> to vector<128x1xf32>
    %83 = vector.broadcast %82 : vector<128x1xf32> to vector<128x64xf32>
    %84 = arith.divf %80, %83 : vector<128x64xf32>
    %85 = arith.truncf %84 : vector<128x64xf32> to vector<128x64xbf16>
    %c0_22 = arith.constant 0 : index
    %c0_23 = arith.constant 0 : index
    %c0_24 = arith.constant 0 : index
    %86 = vector.load %arg5[%c0_22, %c0_23, %c0_24] : memref<1x64x32xbf16, #tpu.memory_space<vmem>>, vector<1x64x32xbf16>
    %87 = vector.shape_cast %86 : vector<1x64x32xbf16> to vector<64x32xbf16>
    %cst_25 = arith.constant dense<0.000000e+00> : vector<128x32xf32>
    %88 = tpu.matmul %85, %87, %cst_25 {dimension_numbers = #tpu.dot_dimension_numbers<[1], [0], [0], [1], [0, 0, 1, 1], [], []>} : vector<128x64xbf16>, vector<64x32xbf16>, vector<128x32xf32> -> vector<128x32xf32>
    %c0_26 = arith.constant 0 : index
    %c0_27 = arith.constant 0 : index
    %c0_28 = arith.constant 0 : index
    %89 = vector.load %arg4[%c0_26, %c0_27, %c0_28] : memref<1x128x32xbf16, #tpu.memory_space<vmem>>, vector<1x128x32xbf16>
    %90 = vector.shape_cast %89 : vector<1x128x32xbf16> to vector<128x32xbf16>
    %c0_29 = arith.constant 0 : index
    %c0_30 = arith.constant 0 : index
    %91 = vector.load %arg6[%c0_29, %c0_30] : memref<32x128xbf16, #tpu.memory_space<vmem>>, vector<32x128xbf16>
    %cst_31 = arith.constant dense<0.000000e+00> : vector<128x128xf32>
    %92 = tpu.matmul %90, %91, %cst_31 {dimension_numbers = #tpu.dot_dimension_numbers<[1], [0], [0], [1], [0, 0, 1, 1], [], []>} : vector<128x32xbf16>, vector<32x128xbf16>, vector<128x128xf32> -> vector<128x128xf32>
    %93 = arith.truncf %88 : vector<128x32xf32> to vector<128x32xbf16>
    %c0_32 = arith.constant 0 : index
    %c0_33 = arith.constant 0 : index
    %94 = vector.load %arg7[%c0_32, %c0_33] : memref<32x128xbf16, #tpu.memory_space<vmem>>, vector<32x128xbf16>
    %cst_34 = arith.constant dense<0.000000e+00> : vector<128x128xf32>
    %95 = tpu.matmul %93, %94, %cst_34 {dimension_numbers = #tpu.dot_dimension_numbers<[1], [0], [0], [1], [0, 0, 1, 1], [], []>} : vector<128x32xbf16>, vector<32x128xbf16>, vector<128x128xf32> -> vector<128x128xf32>
    %96 = arith.addf %92, %95 : vector<128x128xf32>
    %c0_35 = arith.constant 0 : index
    %c0_36 = arith.constant 0 : index
    %97 = vector.load %arg8[%c0_35, %c0_36] : memref<1x128xf32, #tpu.memory_space<vmem>>, vector<1x128xf32>
    %98 = vector.broadcast %97 : vector<1x128xf32> to vector<128x128xf32>
    %99 = arith.addf %96, %98 : vector<128x128xf32>
    %cst_37 = arith.constant 0.000000e+00 : f32
    %100 = vector.broadcast %cst_37 : f32 to vector<128x128xf32>
    %101 = arith.maximumf %99, %100 : vector<128x128xf32>
    %102 = arith.truncf %101 : vector<128x128xf32> to vector<128x128xbf16>
    %c0_38 = arith.constant 0 : index
    %c0_39 = arith.constant 0 : index
    %103 = vector.load %arg9[%c0_38, %c0_39] : memref<128x128xbf16, #tpu.memory_space<vmem>>, vector<128x128xbf16>
    %cst_40 = arith.constant dense<0.000000e+00> : vector<128x128xf32>
    %104 = tpu.matmul %102, %103, %cst_40 {dimension_numbers = #tpu.dot_dimension_numbers<[1], [0], [0], [1], [0, 0, 1, 1], [], []>} : vector<128x128xbf16>, vector<128x128xbf16>, vector<128x128xf32> -> vector<128x128xf32>
    %c0_41 = arith.constant 0 : index
    %c0_42 = arith.constant 0 : index
    %105 = vector.load %arg10[%c0_41, %c0_42] : memref<1x128xf32, #tpu.memory_space<vmem>>, vector<1x128xf32>
    %106 = vector.broadcast %105 : vector<1x128xf32> to vector<128x128xf32>
    %107 = arith.addf %104, %106 : vector<128x128xf32>
    %cst_43 = arith.constant 0.000000e+00 : f32
    %108 = vector.broadcast %cst_43 : f32 to vector<128x128xf32>
    %109 = arith.maximumf %107, %108 : vector<128x128xf32>
    %110 = arith.truncf %109 : vector<128x128xf32> to vector<128x128xbf16>
    %c0_44 = arith.constant 0 : index
    %c0_45 = arith.constant 0 : index
    %c0_46 = arith.constant 0 : index
    %111 = vector.load %arg11[%c0_44, %c0_45, %c0_46] : memref<1x128x128xbf16, #tpu.memory_space<vmem>>, vector<1x128x128xbf16>
    %112 = vector.shape_cast %111 : vector<1x128x128xbf16> to vector<128x128xbf16>
    %113 = vector.shape_cast %110 : vector<128x128xbf16> to vector<1x128x128xbf16>
    tpu.vector_store %arg11[%c0_44, %c0_45, %c0_46], %113 {strides = array<i32>} : memref<1x128x128xbf16, #tpu.memory_space<vmem>>, vector<1x128x128xbf16>,
    return
  }
  func.func @transform_0(%arg0: i32, %arg1: i32) -> (i32, i32, i32) {
    %c0_i32 = arith.constant 0 : i32
    %c0_i32_0 = arith.constant 0 : i32
    return %arg0, %arg1, %c0_i32 : i32, i32, i32
  }
  func.func @transform_1(%arg0: i32, %arg1: i32) -> (i32, i32, i32) {
    %c0_i32 = arith.constant 0 : i32
    %c0_i32_0 = arith.constant 0 : i32
    %c0_i32_1 = arith.constant 0 : i32
    return %arg0, %c0_i32, %c0_i32_0 : i32, i32, i32
  }
  func.func @transform_2(%arg0: i32, %arg1: i32) -> (i32, i32, i32) {
    %c0_i32 = arith.constant 0 : i32
    %c0_i32_0 = arith.constant 0 : i32
    return %arg0, %arg1, %c0_i32 : i32, i32, i32
  }
  func.func @transform_3(%arg0: i32, %arg1: i32) -> (i32, i32, i32) {
    %c0_i32 = arith.constant 0 : i32
    %c0_i32_0 = arith.constant 0 : i32
    %c0_i32_1 = arith.constant 0 : i32
    return %arg0, %c0_i32, %c0_i32_0 : i32, i32, i32
  }
  func.func @transform_4(%arg0: i32, %arg1: i32) -> (i32, i32) {
    %c0_i32 = arith.constant 0 : i32
    %c0_i32_0 = arith.constant 0 : i32
    %c0_i32_1 = arith.constant 0 : i32
    return %c0_i32, %c0_i32_0 : i32, i32
  }
  func.func @transform_5(%arg0: i32, %arg1: i32) -> (i32, i32) {
    %c0_i32 = arith.constant 0 : i32
    %c0_i32_0 = arith.constant 0 : i32
    %c0_i32_1 = arith.constant 0 : i32
    return %c0_i32, %c0_i32_0 : i32, i32
  }
  func.func @transform_6(%arg0: i32, %arg1: i32) -> (i32, i32) {
    %c0_i32 = arith.constant 0 : i32
    %c0_i32_0 = arith.constant 0 : i32
    %c0_i32_1 = arith.constant 0 : i32
    return %c0_i32, %c0_i32_0 : i32, i32
  }
  func.func @transform_7(%arg0: i32, %arg1: i32) -> (i32, i32) {
    %c0_i32 = arith.constant 0 : i32
    %c0_i32_0 = arith.constant 0 : i32
    %c0_i32_1 = arith.constant 0 : i32
    return %c0_i32, %c0_i32_0 : i32, i32
  }
  func.func @transform_8(%arg0: i32, %arg1: i32) -> (i32, i32) {
    %c0_i32 = arith.constant 0 : i32
    %c0_i32_0 = arith.constant 0 : i32
    %c0_i32_1 = arith.constant 0 : i32
    return %c0_i32, %c0_i32_0 : i32, i32
  }
  func.func @transform_9(%arg0: i32, %arg1: i32) -> (i32, i32, i32) {
    %c0_i32 = arith.constant 0 : i32
    %c0_i32_0 = arith.constant 0 : i32
    return %arg0, %arg1, %c0_i32 : i32, i32, i32
  }
}

</mosaic_0001>

<llo_original>
// kernel: tpu_custom_call.1
$region0: #{tpu_custom_call.1}
  #allocation0 [shape = 'u32[]', space=smem, size = 0x4, offset = 0x4, fixed_abs, tag = 'smem constant byte address 0x4 - core index']
  #allocation1 [shape = 'u32[144,128]{1,0:T(1,128)}', space=vmem, size = 0x12000, scoped, tag = 'internal scratch']
  %s0 = inlined_call_operand.vmem [shape: f32[2,256,3], index: 0, kind: input, shape index: {}]
  %s1 = inlined_call_operand.vmem [shape: f32[2,3,64], index: 1, kind: input, shape index: {}]
  %s2 = inlined_call_operand.vmem [shape: bf16[2,256,32], index: 2, kind: input, shape index: {}]
  %s3 = inlined_call_operand.vmem [shape: bf16[2,64,32], index: 3, kind: input, shape index: {}]
  %s4 = inlined_call_operand.vmem [shape: bf16[32,128], index: 4, kind: input, shape index: {}]
  %s5 = inlined_call_operand.vmem [shape: bf16[32,128], index: 5, kind: input, shape index: {}]
  %s6 = inlined_call_operand.vmem [shape: f32[1,128], index: 6, kind: input, shape index: {}]
  %s7 = inlined_call_operand.vmem [shape: bf16[128,128], index: 7, kind: input, shape index: {}]
  %s8 = inlined_call_operand.vmem [shape: f32[1,128], index: 8, kind: input, shape index: {}]
  %s9 = inlined_call_operand.hbm [shape: bf16[2,256,128], index: 9, kind: output, shape index: {}]
  %s10 = sld [smem:[#allocation0]]
  $region69: #{tpu_custom_call.1} parent=0
    _
  %s12 = ssub.s32 1, %s10
  %s13 = scalar_select 0, %s12, %s10
  $region1: #{tpu_custom_call.1} parent=0
    #allocation2 [shape = 'u8[65536]{0}', space=vmem, size = 0x10000, scoped, tag = 'output window, operand 0']
    #allocation3 [shape = 's32[2]{0}', space=sflag, size = 0x8, scoped, tag = 'scoped memory for tpu_custom_call.1']
    %14 = vsyncpa [#allocation3], 0
    %s15 = scalar_lea.sflag [#allocation3], 1
    %16 = vsyncpa %s15, 0
    loop: start=0, step=1, limit=6
    $region2: #{tpu_custom_call.1} parent=1 // loop_pre_header
      _
    $region3: #{tpu_custom_call.1} parent=1 // loop_header
      %s18 = sphi 0, %s22
      %p19 = scmp.ge.s32.totalorder %s18, 6
      %s25 = sphi 0, %s37
      %s26 = sphi 0, %s33
      %s27 = sphi 0, %s25
      %s28 = sphi 0, %s26
      %s29 = sphi 0, %s27
      %s30 = sphi 0, %s28
      %s42 = sphi 0, %s44
      %s45 = sphi 0, %s42
      %s46 = sphi 0, %s45
      %s62 = sphi 0, %s46
      %s68 = sphi 0, %s70
      %s71 = sphi 0, %s68
      %s72 = sphi 0, %s71
      %s88 = sphi 0, %s72
      %s96 = sphi 0, %s98
      %s99 = sphi 0, %s96
      %s100 = sphi 0, %s99
      %s116 = sphi 0, %s100
      %s122 = sphi 0, %s124
      %s125 = sphi 0, %s122
      %s126 = sphi 0, %s125
      %s142 = sphi 0, %s126
      %s146 = sphi 0, %s146
      %s148 = sphi 0, %s146
      %s149 = sphi 0, %s148
      %s163 = sphi 0, %s149
      %s167 = sphi 0, %s167
      %s169 = sphi 0, %s167
      %s170 = sphi 0, %s169
      %s184 = sphi 0, %s170
      %s188 = sphi 0, %s188
      %s190 = sphi 0, %s188
      %s191 = sphi 0, %s190
      %s205 = sphi 0, %s191
      %s209 = sphi 0, %s209
      %s211 = sphi 0, %s209
      %s212 = sphi 0, %s211
      %s226 = sphi 0, %s212
      %s230 = sphi 0, %s230
      %s232 = sphi 0, %s230
      %s233 = sphi 0, %s232
      %s247 = sphi 0, %s233
      %s255 = sphi 0, %s257
      %s258 = sphi 0, %s255
      %s259 = sphi 0, %s258
      %s275 = sphi 0, %s259
    $region4: #{tpu_custom_call.1} parent=1 // loop_header_branch
      %21 = sbr.rel (%p19) target = $region8
    $region5: #{tpu_custom_call.1} parent=1 // loop_body
      %s23 = ssub.s32 %s18, 1
      %s24 = ssub.s32 %s18, 2
      %s31 = sadd.s32 1, %s26
      %p32 = scmp.ge.s32.totalorder %s31, 2
      %s33 = scalar_select %p32, 0, %s31
      %s34 = sadd.s32 1, %s25
      %s35 = scalar_select %p32, %s34, %s25
      %p36 = scmp.ge.s32.totalorder %s35, 2
      %s37 = scalar_select %p36, 0, %s35
      %s38 = ssub.s32 %s25, %s37
      %s39 = ssub.s32 %s26, %s33
      %s40 = sor.u32 %s38, %s39
      %p41 = scmp.eq.s32.totalorder %s40, 0
      %s43 = sadd.s32 %s42, 1
      %s44 = scalar_select %p41, %s42, %s43
      %p47 = pneg %p41
      %p48 = scmp.eq.s32.totalorder %s18, 3
      %p49 = por %p47, %p48
      %p50 = scmp.ne.s32.totalorder %s42, %s45
      %p51 = scmp.eq.s32.totalorder %s18, 0
      %p52 = por %p50, %p51
      %p53 = scmp.ne.s32.totalorder %s42, %s45
      %p54 = scmp.eq.s32.totalorder %s23, 3
      %p55 = por %p53, %p54
      %p56 = scmp.ne.s32.totalorder %s45, %s46
      %p57 = scmp.eq.s32.totalorder %s23, 0
      %p58 = por %p56, %p57
      %p59 = scmp.ne.s32.totalorder %s45, %s46
      %p60 = scmp.eq.s32.totalorder %s24, 3
      %p61 = por %p59, %p60
      %p63 = scmp.ne.s32.totalorder %s46, %s62
      %p64 = scmp.eq.s32.totalorder %s24, 0
      %p65 = por %p63, %p64
      %s66 = ssub.s32 %s25, %s37
      %p67 = scmp.eq.s32.totalorder %s66, 0
      %s69 = sadd.s32 %s68, 1
      %s70 = scalar_select %p67, %s68, %s69
      %p73 = pneg %p67
      %p74 = scmp.eq.s32.totalorder %s18, 3
      %p75 = por %p73, %p74
      %p76 = scmp.ne.s32.totalorder %s68, %s71
      %p77 = scmp.eq.s32.totalorder %s18, 0
      %p78 = por %p76, %p77
      %p79 = scmp.ne.s32.totalorder %s68, %s71
      %p80 = scmp.eq.s32.totalorder %s23, 3
      %p81 = por %p79, %p80
      %p82 = scmp.ne.s32.totalorder %s71, %s72
      %p83 = scmp.eq.s32.totalorder %s23, 0
      %p84 = por %p82, %p83
      %p85 = scmp.ne.s32.totalorder %s71, %s72
      %p86 = scmp.eq.s32.totalorder %s24, 3
      %p87 = por %p85, %p86
      %p89 = scmp.ne.s32.totalorder %s72, %s88
      %p90 = scmp.eq.s32.totalorder %s24, 0
      %p91 = por %p89, %p90
      %s92 = ssub.s32 %s25, %s37
      %s93 = ssub.s32 %s26, %s33
      %s94 = sor.u32 %s92, %s93
      %p95 = scmp.eq.s32.totalorder %s94, 0
      %s97 = sadd.s32 %s96, 1
      %s98 = scalar_select %p95, %s96, %s97
      %p101 = pneg %p95
      %p102 = scmp.eq.s32.totalorder %s18, 3
      %p103 = por %p101, %p102
      %p104 = scmp.ne.s32.totalorder %s96, %s99
      %p105 = scmp.eq.s32.totalorder %s18, 0
      %p106 = por %p104, %p105
      %p107 = scmp.ne.s32.totalorder %s96, %s99
      %p108 = scmp.eq.s32.totalorder %s23, 3
      %p109 = por %p107, %p108
      %p110 = scmp.ne.s32.totalorder %s99, %s100
      %p111 = scmp.eq.s32.totalorder %s23, 0
      %p112 = por %p110, %p111
      %p113 = scmp.ne.s32.totalorder %s99, %s100
      %p114 = scmp.eq.s32.totalorder %s24, 3
      %p115 = por %p113, %p114
      %p117 = scmp.ne.s32.totalorder %s100, %s116
      %p118 = scmp.eq.s32.totalorder %s24, 0
      %p119 = por %p117, %p118
      %s120 = ssub.s32 %s25, %s37
      %p121 = scmp.eq.s32.totalorder %s120, 0
      %s123 = sadd.s32 %s122, 1
      %s124 = scalar_select %p121, %s122, %s123
      %p127 = pneg %p121
      %p128 = scmp.eq.s32.totalorder %s18, 3
      %p129 = por %p127, %p128
      %p130 = scmp.ne.s32.totalorder %s122, %s125
      %p131 = scmp.eq.s32.totalorder %s18, 0
      %p132 = por %p130, %p131
      %p133 = scmp.ne.s32.totalorder %s122, %s125
      %p134 = scmp.eq.s32.totalorder %s23, 3
      %p135 = por %p133, %p134
      %p136 = scmp.ne.s32.totalorder %s125, %s126
      %p137 = scmp.eq.s32.totalorder %s23, 0
      %p138 = por %p136, %p137
      %p139 = scmp.ne.s32.totalorder %s125, %s126
      %p140 = scmp.eq.s32.totalorder %s24, 3
      %p141 = por %p139, %p140
      %p143 = scmp.ne.s32.totalorder %s126, %s142
      %p144 = scmp.eq.s32.totalorder %s24, 0
      %p145 = por %p143, %p144
      %s147 = sadd.s32 %s146, 1
      %p150 = scmp.eq.s32.totalorder %s18, 3
      %p151 = scmp.ne.s32.totalorder %s146, %s148
      %p152 = scmp.eq.s32.totalorder %s18, 0
      %p153 = por %p151, %p152
      %p154 = scmp.ne.s32.totalorder %s146, %s148
      %p155 = scmp.eq.s32.totalorder %s23, 3
      %p156 = por %p154, %p155
      %p157 = scmp.ne.s32.totalorder %s148, %s149
      %p158 = scmp.eq.s32.totalorder %s23, 0
      %p159 = por %p157, %p158
      %p160 = scmp.ne.s32.totalorder %s148, %s149
      %p161 = scmp.eq.s32.totalorder %s24, 3
      %p162 = por %p160, %p161
      %p164 = scmp.ne.s32.totalorder %s149, %s163
      %p165 = scmp.eq.s32.totalorder %s24, 0
      %p166 = por %p164, %p165
      %s168 = sadd.s32 %s167, 1
      %p171 = scmp.eq.s32.totalorder %s18, 3
      %p172 = scmp.ne.s32.totalorder %s167, %s169
      %p173 = scmp.eq.s32.totalorder %s18, 0
      %p174 = por %p172, %p173
      %p175 = scmp.ne.s32.totalorder %s167, %s169
      %p176 = scmp.eq.s32.totalorder %s23, 3
      %p177 = por %p175, %p176
      %p178 = scmp.ne.s32.totalorder %s169, %s170
      %p179 = scmp.eq.s32.totalorder %s23, 0
      %p180 = por %p178, %p179
      %p181 = scmp.ne.s32.totalorder %s169, %s170
      %p182 = scmp.eq.s32.totalorder %s24, 3
      %p183 = por %p181, %p182
      %p185 = scmp.ne.s32.totalorder %s170, %s184
      %p186 = scmp.eq.s32.totalorder %s24, 0
      %p187 = por %p185, %p186
      %s189 = sadd.s32 %s188, 1
      %p192 = scmp.eq.s32.totalorder %s18, 3
      %p193 = scmp.ne.s32.totalorder %s188, %s190
      %p194 = scmp.eq.s32.totalorder %s18, 0
      %p195 = por %p193, %p194
      %p196 = scmp.ne.s32.totalorder %s188, %s190
      %p197 = scmp.eq.s32.totalorder %s23, 3
      %p198 = por %p196, %p197
      %p199 = scmp.ne.s32.totalorder %s190, %s191
      %p200 = scmp.eq.s32.totalorder %s23, 0
      %p201 = por %p199, %p200
      %p202 = scmp.ne.s32.totalorder %s190, %s191
      %p203 = scmp.eq.s32.totalorder %s24, 3
      %p204 = por %p202, %p203
      %p206 = scmp.ne.s32.totalorder %s191, %s205
      %p207 = scmp.eq.s32.totalorder %s24, 0
      %p208 = por %p206, %p207
      %s210 = sadd.s32 %s209, 1
      %p213 = scmp.eq.s32.totalorder %s18, 3
      %p214 = scmp.ne.s32.totalorder %s209, %s211
      %p215 = scmp.eq.s32.totalorder %s18, 0
      %p216 = por %p214, %p215
      %p217 = scmp.ne.s32.totalorder %s209, %s211
      %p218 = scmp.eq.s32.totalorder %s23, 3
      %p219 = por %p217, %p218
      %p220 = scmp.ne.s32.totalorder %s211, %s212
      %p221 = scmp.eq.s32.totalorder %s23, 0
      %p222 = por %p220, %p221
      %p223 = scmp.ne.s32.totalorder %s211, %s212
      %p224 = scmp.eq.s32.totalorder %s24, 3
      %p225 = por %p223, %p224
      %p227 = scmp.ne.s32.totalorder %s212, %s226
      %p228 = scmp.eq.s32.totalorder %s24, 0
      %p229 = por %p227, %p228
      %s231 = sadd.s32 %s230, 1
      %p234 = scmp.eq.s32.totalorder %s18, 3
      %p235 = scmp.ne.s32.totalorder %s230, %s232
      %p236 = scmp.eq.s32.totalorder %s18, 0
      %p237 = por %p235, %p236
      %p238 = scmp.ne.s32.totalorder %s230, %s232
      %p239 = scmp.eq.s32.totalorder %s23, 3
      %p240 = por %p238, %p239
      %p241 = scmp.ne.s32.totalorder %s232, %s233
      %p242 = scmp.eq.s32.totalorder %s23, 0
      %p243 = por %p241, %p242
      %p244 = scmp.ne.s32.totalorder %s232, %s233
      %p245 = scmp.eq.s32.totalorder %s24, 3
      %p246 = por %p244, %p245
      %p248 = scmp.ne.s32.totalorder %s233, %s247
      %p249 = scmp.eq.s32.totalorder %s24, 0
      %p250 = por %p248, %p249
      %s251 = ssub.s32 %s25, %s37
      %s252 = ssub.s32 %s26, %s33
      %s253 = sor.u32 %s251, %s252
      %p254 = scmp.eq.s32.totalorder %s253, 0
      %s256 = sadd.s32 %s255, 1
      %s257 = scalar_select %p254, %s255, %s256
      %p260 = pneg %p254
      %p261 = scmp.eq.s32.totalorder %s18, 3
      %p262 = por %p260, %p261
      %p263 = scmp.ne.s32.totalorder %s255, %s258
      %p264 = scmp.eq.s32.totalorder %s18, 0
      %p265 = por %p263, %p264
      %p266 = scmp.ne.s32.totalorder %s255, %s258
      %p267 = scmp.eq.s32.totalorder %s23, 3
      %p268 = por %p266, %p267
      %p269 = scmp.ne.s32.totalorder %s258, %s259
      %p270 = scmp.eq.s32.totalorder %s23, 0
      %p271 = por %p269, %p270
      %p272 = scmp.ne.s32.totalorder %s258, %s259
      %p273 = scmp.eq.s32.totalorder %s24, 3
      %p274 = por %p272, %p273
      %p276 = scmp.ne.s32.totalorder %s259, %s275
      %p277 = scmp.eq.s32.totalorder %s24, 0
      %p278 = por %p276, %p277
      %p279 = scmp.le.s32.totalorder 1, %s18
      %p280 = scmp.lt.s32.totalorder %s18, 5
      %p281 = pnand %p279, %p280
      %p282 = pneg %p281
      // Predicated region
      $region9: #{tpu_custom_call.1} parent=5 // pred_check
        _
      $region10: #{tpu_custom_call.1} parent=5 // pred_check_branch
        %284 = sbr.rel (%p281) target = $region12
      $region11: #{tpu_custom_call.1} parent=5 // pred_region
        %s285 = ssub.s32 %s18, 1
        // Predicated region
        $region13: #{tpu_custom_call.1} parent=11 // pred_check
          %p286 = pneg %p159
        $region14: #{tpu_custom_call.1} parent=11 // pred_check_branch
          %288 = sbr.rel (%p286) target = $region16
        $region15: #{tpu_custom_call.1} parent=11 // pred_region
          _
        $region16: #{tpu_custom_call.1} parent=11 // pred_fallthru
          _
        // Predicated region
        $region17: #{tpu_custom_call.1} parent=11 // pred_check
          %p289 = pneg %p180
        $region18: #{tpu_custom_call.1} parent=11 // pred_check_branch
          %291 = sbr.rel (%p289) target = $region20
        $region19: #{tpu_custom_call.1} parent=11 // pred_region
          _
        $region20: #{tpu_custom_call.1} parent=11 // pred_fallthru
          _
        // Predicated region
        $region21: #{tpu_custom_call.1} parent=11 // pred_check
          %p292 = pneg %p201
        $region22: #{tpu_custom_call.1} parent=11 // pred_check_branch
          %294 = sbr.rel (%p292) target = $region24
        $region23: #{tpu_custom_call.1} parent=11 // pred_region
          _
        $region24: #{tpu_custom_call.1} parent=11 // pred_fallthru
          _
        // Predicated region
        $region25: #{tpu_custom_call.1} parent=11 // pred_check
          %p295 = pneg %p222
        $region26: #{tpu_custom_call.1} parent=11 // pred_check_branch
          %297 = sbr.rel (%p295) target = $region28
        $region27: #{tpu_custom_call.1} parent=11 // pred_region
          _
        $region28: #{tpu_custom_call.1} parent=11 // pred_fallthru
          _
        // Predicated region
        $region29: #{tpu_custom_call.1} parent=11 // pred_check
          %p298 = pneg %p243
        $region30: #{tpu_custom_call.1} parent=11 // pred_check_branch
          %300 = sbr.rel (%p298) target = $region32
        $region31: #{tpu_custom_call.1} parent=11 // pred_region
          _
        $region32: #{tpu_custom_call.1} parent=11 // pred_fallthru
          _
      $region12: #{tpu_custom_call.1} parent=5 // pred_fallthru
        _
      %p301 = scmp.lt.s32.totalorder %s18, 4
      // Predicated region
      $region33: #{tpu_custom_call.1} parent=5 // pred_check
        %p302 = pneg %p301
      $region34: #{tpu_custom_call.1} parent=5 // pred_check_branch
        %304 = sbr.rel (%p302) target = $region36
      $region35: #{tpu_custom_call.1} parent=5 // pred_region
        // Predicated region
        $region37: #{tpu_custom_call.1} parent=35 // pred_check
          %p305 = pneg %p52
        $region38: #{tpu_custom_call.1} parent=35 // pred_check_branch
          %307 = sbr.rel (%p305) target = $region40
        $region39: #{tpu_custom_call.1} parent=35 // pred_region
          %s308 = smul.u32 16, %s26
          %p309 = scmp.lt.s32.totalorder %s25, 1
          %s310 = scalar_select %p309, %s25, 1
          %p311 = scmp.lt.s32.totalorder %s308, 31
          %s312 = scalar_select %p311, %s308, 31
          %s313 = smul.addr %s310, 32
          %s314 = sadd.s32 %s312, %s313
          %s315 = smul.addr %s314, 8
          %s316 = scalar_lea.vmem %s0, %s315
          %s317 = smul.u32 16, %s26
        $region40: #{tpu_custom_call.1} parent=35 // pred_fallthru
          _
        // Predicated region
        $region41: #{tpu_custom_call.1} parent=35 // pred_check
          %p318 = pneg %p78
        $region42: #{tpu_custom_call.1} parent=35 // pred_check_branch
          %320 = sbr.rel (%p318) target = $region44
        $region43: #{tpu_custom_call.1} parent=35 // pred_region
          %p321 = scmp.lt.s32.totalorder %s25, 1
          %s322 = scalar_select %p321, %s25, 1
          %s323 = smul.addr %s322, 4
          %s324 = scalar_lea.vmem %s1, %s323
        $region44: #{tpu_custom_call.1} parent=35 // pred_fallthru
          _
        // Predicated region
        $region45: #{tpu_custom_call.1} parent=35 // pred_check
          %p325 = pneg %p106
        $region46: #{tpu_custom_call.1} parent=35 // pred_check_branch
          %327 = sbr.rel (%p325) target = $region48
        $region47: #{tpu_custom_call.1} parent=35 // pred_region
          %s328 = smul.u32 16, %s26
          %p329 = scmp.lt.s32.totalorder %s25, 1
          %s330 = scalar_select %p329, %s25, 1
          %p331 = scmp.lt.s32.totalorder %s328, 31
          %s332 = scalar_select %p331, %s328, 31
          %s333 = smul.addr %s330, 32
          %s334 = sadd.s32 %s332, %s333
          %s335 = smul.addr %s334, 4
          %s336 = scalar_lea.vmem %s2, %s335
          %s337 = smul.u32 16, %s26
        $region48: #{tpu_custom_call.1} parent=35 // pred_fallthru
          _
        // Predicated region
        $region49: #{tpu_custom_call.1} parent=35 // pred_check
          %p338 = pneg %p132
        $region50: #{tpu_custom_call.1} parent=35 // pred_check_branch
          %340 = sbr.rel (%p338) target = $region52
        $region51: #{tpu_custom_call.1} parent=35 // pred_region
          %p341 = scmp.lt.s32.totalorder %s25, 1
          %s342 = scalar_select %p341, %s25, 1
          %s343 = smul.addr %s342, 8
          %s344 = smul.addr %s343, 4
          %s345 = scalar_lea.vmem %s3, %s344
        $region52: #{tpu_custom_call.1} parent=35 // pred_fallthru
          _
      $region36: #{tpu_custom_call.1} parent=5 // pred_fallthru
        _
      %p346 = scmp.le.s32.totalorder 1, %s18
      %p347 = scmp.lt.s32.totalorder %s18, 5
      %p348 = pnand %p346, %p347
      %p349 = pneg %p348
      // Predicated region
      $region53: #{tpu_custom_call.1} parent=5 // pred_check
        _
      $region54: #{tpu_custom_call.1} parent=5 // pred_check_branch
        %351 = sbr.rel (%p348) target = $region56
      $region55: #{tpu_custom_call.1} parent=5 // pred_region
        %s352 = ssub.s32 %s18, 1
        %s353 = smul.u32 16, %s28
        %p354 = scmp.lt.s32.totalorder %s27, 1
        %s355 = scalar_select %p354, %s27, 1
        %p356 = scmp.lt.s32.totalorder %s353, 31
        %s357 = scalar_select %p356, %s353, 31
        %s358 = smul.addr %s355, 32
        %s359 = sadd.s32 %s357, %s358
        %s360 = smul.addr %s359, 8
        %s361 = scalar_lea.vmem %s0, %s360
        %p362 = pneg %p58
        %p363 = pneg %p55
        %p364 = scmp.lt.s32.totalorder %s27, 1
        %s365 = scalar_select %p364, %s27, 1
        %s366 = smul.addr %s365, 4
        %s367 = scalar_lea.vmem %s1, %s366
        %p368 = pneg %p84
        %p369 = pneg %p81
        %s370 = smul.u32 16, %s28
        %p371 = scmp.lt.s32.totalorder %s27, 1
        %s372 = scalar_select %p371, %s27, 1
        %p373 = scmp.lt.s32.totalorder %s370, 31
        %s374 = scalar_select %p373, %s370, 31
        %s375 = smul.addr %s372, 32
        %s376 = sadd.s32 %s374, %s375
        %s377 = smul.addr %s376, 4
        %s378 = scalar_lea.vmem %s2, %s377
        %p379 = pneg %p112
        %p380 = pneg %p109
        %p381 = scmp.lt.s32.totalorder %s27, 1
        %s382 = scalar_select %p381, %s27, 1
        %s383 = smul.addr %s382, 8
        %s384 = smul.addr %s383, 4
        %s385 = scalar_lea.vmem %s3, %s384
        %p386 = pneg %p138
        %p387 = pneg %p135
        %p388 = pneg %p159
        %p389 = pneg %p156
        %p390 = pneg %p180
        %p391 = pneg %p177
        %p392 = pneg %p201
        %p393 = pneg %p198
        %p394 = pneg %p222
        %p395 = pneg %p219
        %p396 = pneg %p243
        %p397 = pneg %p240
        %p398 = pneg %p271
        %p399 = pneg %p268
        %s400 = sand.u32 %s258, 1
        %s401 = scalar_lea.sflag [#allocation3], %s400
        %s402 = sand.u32 %s258, 1
        %s403 = smul.addr %s402, 64
        %s404 = scalar_lea.vmem [#allocation2], %s403
        %s405 = smul.u32 16, %s28
        %p406 = scmp.lt.s32.totalorder %s27, 1
        %s407 = scalar_select %p406, %s27, 1
        %p408 = scmp.lt.s32.totalorder %s405, 31
        %s409 = scalar_select %p408, %s405, 31
        %s410 = smul.addr %s407, 32
        %s411 = sadd.s32 %s409, %s410
        %s412 = smul.addr %s411, 8
        %s413 = scalar_lea.vmem %s0, %s412
        %s414 = smul.u32 16, %s28
        %p415 = scmp.lt.s32.totalorder %s27, 1
        %s416 = scalar_select %p415, %s27, 1
        %s417 = smul.addr %s416, 4
        %s418 = scalar_lea.vmem %s1, %s417
        %s419 = smul.u32 16, %s28
        %p420 = scmp.lt.s32.totalorder %s27, 1
        %s421 = scalar_select %p420, %s27, 1
        %p422 = scmp.lt.s32.totalorder %s419, 31
        %s423 = scalar_select %p422, %s419, 31
        %s424 = smul.addr %s421, 32
        %s425 = sadd.s32 %s423, %s424
        %s426 = smul.addr %s425, 4
        %s427 = scalar_lea.vmem %s2, %s426
        %s428 = smul.u32 16, %s28
        %p429 = scmp.lt.s32.totalorder %s27, 1
        %s430 = scalar_select %p429, %s27, 1
        %s431 = smul.addr %s430, 8
        %s432 = smul.addr %s431, 4
        %s433 = scalar_lea.vmem %s3, %s432
        %s434 = smul.u32 16, %s28
        %v436 = vld [vmem:[%s413] sm:$0xff]
        %v437 = vld [vmem:[%s413 + $0x8] sm:$0xff]
        %v438 = vld [vmem:[%s413 + $0x10] sm:$0xff]
        %v439 = vld [vmem:[%s413 + $0x18] sm:$0xff]
        %v440 = vld [vmem:[%s413 + $0x20] sm:$0xff]
        %v441 = vld [vmem:[%s413 + $0x28] sm:$0xff]
        %v442 = vld [vmem:[%s413 + $0x30] sm:$0xff]
        %v443 = vld [vmem:[%s413 + $0x38] sm:$0xff]
        %v444 = vld [vmem:[%s413 + $0x40] sm:$0xff]
        %v445 = vld [vmem:[%s413 + $0x48] sm:$0xff]
        %v446 = vld [vmem:[%s413 + $0x50] sm:$0xff]
        %v447 = vld [vmem:[%s413 + $0x58] sm:$0xff]
        %v448 = vld [vmem:[%s413 + $0x60] sm:$0xff]
        %v449 = vld [vmem:[%s413 + $0x68] sm:$0xff]
        %v450 = vld [vmem:[%s413 + $0x70] sm:$0xff]
        %v451 = vld [vmem:[%s413 + $0x78] sm:$0xff]
        %v452 = vld [vmem:[%s418] sm:$0x7]
        %454 = vset.pattern.permute.xlu0 0
        %455 = vperm.xlu0 %454, %v436
        %v456 = vpop.permute.xlu0 %455
        %459 = vset.pattern.permute.xlu0 0
        %460 = vperm.xlu0 %459, %v437
        %v461 = vpop.permute.xlu0 %460
        %464 = vset.pattern.permute.xlu0 0
        %465 = vperm.xlu0 %464, %v438
        %v466 = vpop.permute.xlu0 %465
        %469 = vset.pattern.permute.xlu0 0
        %470 = vperm.xlu0 %469, %v439
        %v471 = vpop.permute.xlu0 %470
        %474 = vset.pattern.permute.xlu0 0
        %475 = vperm.xlu0 %474, %v440
        %v476 = vpop.permute.xlu0 %475
        %479 = vset.pattern.permute.xlu0 0
        %480 = vperm.xlu0 %479, %v441
        %v481 = vpop.permute.xlu0 %480
        %484 = vset.pattern.permute.xlu0 0
        %485 = vperm.xlu0 %484, %v442
        %v486 = vpop.permute.xlu0 %485
        %489 = vset.pattern.permute.xlu0 0
        %490 = vperm.xlu0 %489, %v443
        %v491 = vpop.permute.xlu0 %490
        %494 = vset.pattern.permute.xlu0 0
        %495 = vperm.xlu0 %494, %v444
        %v496 = vpop.permute.xlu0 %495
        %499 = vset.pattern.permute.xlu0 0
        %500 = vperm.xlu0 %499, %v445
        %v501 = vpop.permute.xlu0 %500
        %504 = vset.pattern.permute.xlu0 0
        %505 = vperm.xlu0 %504, %v446
        %v506 = vpop.permute.xlu0 %505
        %509 = vset.pattern.permute.xlu0 0
        %510 = vperm.xlu0 %509, %v447
        %v511 = vpop.permute.xlu0 %510
        %514 = vset.pattern.permute.xlu0 0
        %515 = vperm.xlu0 %514, %v448
        %v516 = vpop.permute.xlu0 %515
        %519 = vset.pattern.permute.xlu0 0
        %520 = vperm.xlu0 %519, %v449
        %v521 = vpop.permute.xlu0 %520
        %524 = vset.pattern.permute.xlu0 0
        %525 = vperm.xlu0 %524, %v450
        %v526 = vpop.permute.xlu0 %525
        %529 = vset.pattern.permute.xlu0 0
        %530 = vperm.xlu0 %529, %v451
        %v531 = vpop.permute.xlu0 %530
        %v533 = vlaneseq
        %v534 = vshrl.u32 %v533, 7
        %v535 = vsub.s32 0, %v534
        %v536 = vrot.slane %v452, %v535
        %v537 = vsub.f32 %v456, %v536
        %v538 = vsub.f32 %v461, %v536
        %v539 = vsub.f32 %v466, %v536
        %v540 = vsub.f32 %v471, %v536
        %v541 = vsub.f32 %v476, %v536
        %v542 = vsub.f32 %v481, %v536
        %v543 = vsub.f32 %v486, %v536
        %v544 = vsub.f32 %v491, %v536
        %v545 = vsub.f32 %v496, %v536
        %v546 = vsub.f32 %v501, %v536
        %v547 = vsub.f32 %v506, %v536
        %v548 = vsub.f32 %v511, %v536
        %v549 = vsub.f32 %v516, %v536
        %v550 = vsub.f32 %v521, %v536
        %v551 = vsub.f32 %v526, %v536
        %v552 = vsub.f32 %v531, %v536
        %v553 = vmul.f32 %v537, %v537
        %v554 = vmul.f32 %v538, %v538
        %v555 = vmul.f32 %v539, %v539
        %v556 = vmul.f32 %v540, %v540
        %v557 = vmul.f32 %v541, %v541
        %v558 = vmul.f32 %v542, %v542
        %v559 = vmul.f32 %v543, %v543
        %v560 = vmul.f32 %v544, %v544
        %v561 = vmul.f32 %v545, %v545
        %v562 = vmul.f32 %v546, %v546
        %v563 = vmul.f32 %v547, %v547
        %v564 = vmul.f32 %v548, %v548
        %v565 = vmul.f32 %v549, %v549
        %v566 = vmul.f32 %v550, %v550
        %v567 = vmul.f32 %v551, %v551
        %v568 = vmul.f32 %v552, %v552
        %569 = vset.pattern.permute.xlu0 1
        %570 = vperm.xlu0 %569, %v436
        %v571 = vpop.permute.xlu0 %570
        %573 = vset.pattern.permute.xlu0 1
        %574 = vperm.xlu0 %573, %v437
        %v575 = vpop.permute.xlu0 %574
        %577 = vset.pattern.permute.xlu0 1
        %578 = vperm.xlu0 %577, %v438
        %v579 = vpop.permute.xlu0 %578
        %581 = vset.pattern.permute.xlu0 1
        %582 = vperm.xlu0 %581, %v439
        %v583 = vpop.permute.xlu0 %582
        %585 = vset.pattern.permute.xlu0 1
        %586 = vperm.xlu0 %585, %v440
        %v587 = vpop.permute.xlu0 %586
        %589 = vset.pattern.permute.xlu0 1
        %590 = vperm.xlu0 %589, %v441
        %v591 = vpop.permute.xlu0 %590
        %593 = vset.pattern.permute.xlu0 1
        %594 = vperm.xlu0 %593, %v442
        %v595 = vpop.permute.xlu0 %594
        %597 = vset.pattern.permute.xlu0 1
        %598 = vperm.xlu0 %597, %v443
        %v599 = vpop.permute.xlu0 %598
        %601 = vset.pattern.permute.xlu0 1
        %602 = vperm.xlu0 %601, %v444
        %v603 = vpop.permute.xlu0 %602
        %605 = vset.pattern.permute.xlu0 1
        %606 = vperm.xlu0 %605, %v445
        %v607 = vpop.permute.xlu0 %606
        %609 = vset.pattern.permute.xlu0 1
        %610 = vperm.xlu0 %609, %v446
        %v611 = vpop.permute.xlu0 %610
        %613 = vset.pattern.permute.xlu0 1
        %614 = vperm.xlu0 %613, %v447
        %v615 = vpop.permute.xlu0 %614
        %617 = vset.pattern.permute.xlu0 1
        %618 = vperm.xlu0 %617, %v448
        %v619 = vpop.permute.xlu0 %618
        %621 = vset.pattern.permute.xlu0 1
        %622 = vperm.xlu0 %621, %v449
        %v623 = vpop.permute.xlu0 %622
        %625 = vset.pattern.permute.xlu0 1
        %626 = vperm.xlu0 %625, %v450
        %v627 = vpop.permute.xlu0 %626
        %629 = vset.pattern.permute.xlu0 1
        %630 = vperm.xlu0 %629, %v451
        %v631 = vpop.permute.xlu0 %630
        %v633 = vlaneseq
        %v634 = vshrl.u32 %v633, 7
        %v635 = vsub.s32 1, %v634
        %v636 = vrot.slane %v452, %v635
        %v637 = vsub.f32 %v571, %v636
        %v638 = vsub.f32 %v575, %v636
        %v639 = vsub.f32 %v579, %v636
        %v640 = vsub.f32 %v583, %v636
        %v641 = vsub.f32 %v587, %v636
        %v642 = vsub.f32 %v591, %v636
        %v643 = vsub.f32 %v595, %v636
        %v644 = vsub.f32 %v599, %v636
        %v645 = vsub.f32 %v603, %v636
        %v646 = vsub.f32 %v607, %v636
        %v647 = vsub.f32 %v611, %v636
        %v648 = vsub.f32 %v615, %v636
        %v649 = vsub.f32 %v619, %v636
        %v650 = vsub.f32 %v623, %v636
        %v651 = vsub.f32 %v627, %v636
        %v652 = vsub.f32 %v631, %v636
        %v653 = vmul.f32 %v637, %v637
        %v654 = vmul.f32 %v638, %v638
        %v655 = vmul.f32 %v639, %v639
        %v656 = vmul.f32 %v640, %v640
        %v657 = vmul.f32 %v641, %v641
        %v658 = vmul.f32 %v642, %v642
        %v659 = vmul.f32 %v643, %v643
        %v660 = vmul.f32 %v644, %v644
        %v661 = vmul.f32 %v645, %v645
        %v662 = vmul.f32 %v646, %v646
        %v663 = vmul.f32 %v647, %v647
        %v664 = vmul.f32 %v648, %v648
        %v665 = vmul.f32 %v649, %v649
        %v666 = vmul.f32 %v650, %v650
        %v667 = vmul.f32 %v651, %v651
        %v668 = vmul.f32 %v652, %v652
        %v669 = vadd.f32 %v553, %v653
        %v670 = vadd.f32 %v554, %v654
        %v671 = vadd.f32 %v555, %v655
        %v672 = vadd.f32 %v556, %v656
        %v673 = vadd.f32 %v557, %v657
        %v674 = vadd.f32 %v558, %v658
        %v675 = vadd.f32 %v559, %v659
        %v676 = vadd.f32 %v560, %v660
        %v677 = vadd.f32 %v561, %v661
        %v678 = vadd.f32 %v562, %v662
        %v679 = vadd.f32 %v563, %v663
        %v680 = vadd.f32 %v564, %v664
        %v681 = vadd.f32 %v565, %v665
        %v682 = vadd.f32 %v566, %v666
        %v683 = vadd.f32 %v567, %v667
        %v684 = vadd.f32 %v568, %v668
        %685 = vset.pattern.permute.xlu0 2
        %686 = vperm.xlu0 %685, %v436
        %v687 = vpop.permute.xlu0 %686
        %689 = vset.pattern.permute.xlu0 2
        %690 = vperm.xlu0 %689, %v437
        %v691 = vpop.permute.xlu0 %690
        %693 = vset.pattern.permute.xlu0 2
        %694 = vperm.xlu0 %693, %v438
        %v695 = vpop.permute.xlu0 %694
        %697 = vset.pattern.permute.xlu0 2
        %698 = vperm.xlu0 %697, %v439
        %v699 = vpop.permute.xlu0 %698
        %701 = vset.pattern.permute.xlu0 2
        %702 = vperm.xlu0 %701, %v440
        %v703 = vpop.permute.xlu0 %702
        %705 = vset.pattern.permute.xlu0 2
        %706 = vperm.xlu0 %705, %v441
        %v707 = vpop.permute.xlu0 %706
        %709 = vset.pattern.permute.xlu0 2
        %710 = vperm.xlu0 %709, %v442
        %v711 = vpop.permute.xlu0 %710
        %713 = vset.pattern.permute.xlu0 2
        %714 = vperm.xlu0 %713, %v443
        %v715 = vpop.permute.xlu0 %714
        %717 = vset.pattern.permute.xlu0 2
        %718 = vperm.xlu0 %717, %v444
        %v719 = vpop.permute.xlu0 %718
        %721 = vset.pattern.permute.xlu0 2
        %722 = vperm.xlu0 %721, %v445
        %v723 = vpop.permute.xlu0 %722
        %725 = vset.pattern.permute.xlu0 2
        %726 = vperm.xlu0 %725, %v446
        %v727 = vpop.permute.xlu0 %726
        %729 = vset.pattern.permute.xlu0 2
        %730 = vperm.xlu0 %729, %v447
        %v731 = vpop.permute.xlu0 %730
        %733 = vset.pattern.permute.xlu0 2
        %734 = vperm.xlu0 %733, %v448
        %v735 = vpop.permute.xlu0 %734
        %737 = vset.pattern.permute.xlu0 2
        %738 = vperm.xlu0 %737, %v449
        %v739 = vpop.permute.xlu0 %738
        %741 = vset.pattern.permute.xlu0 2
        %742 = vperm.xlu0 %741, %v450
        %v743 = vpop.permute.xlu0 %742
        %745 = vset.pattern.permute.xlu0 2
        %746 = vperm.xlu0 %745, %v451
        %v747 = vpop.permute.xlu0 %746
        %v749 = vlaneseq
        %v750 = vshrl.u32 %v749, 7
        %v751 = vsub.s32 2, %v750
        %v752 = vrot.slane %v452, %v751
        %v753 = vsub.f32 %v687, %v752
        %v754 = vsub.f32 %v691, %v752
        %v755 = vsub.f32 %v695, %v752
        %v756 = vsub.f32 %v699, %v752
        %v757 = vsub.f32 %v703, %v752
        %v758 = vsub.f32 %v707, %v752
        %v759 = vsub.f32 %v711, %v752
        %v760 = vsub.f32 %v715, %v752
        %v761 = vsub.f32 %v719, %v752
        %v762 = vsub.f32 %v723, %v752
        %v763 = vsub.f32 %v727, %v752
        %v764 = vsub.f32 %v731, %v752
        %v765 = vsub.f32 %v735, %v752
        %v766 = vsub.f32 %v739, %v752
        %v767 = vsub.f32 %v743, %v752
        %v768 = vsub.f32 %v747, %v752
        %v769 = vmul.f32 %v753, %v753
        %v770 = vmul.f32 %v754, %v754
        %v771 = vmul.f32 %v755, %v755
        %v772 = vmul.f32 %v756, %v756
        %v773 = vmul.f32 %v757, %v757
        %v774 = vmul.f32 %v758, %v758
        %v775 = vmul.f32 %v759, %v759
        %v776 = vmul.f32 %v760, %v760
        %v777 = vmul.f32 %v761, %v761
        %v778 = vmul.f32 %v762, %v762
        %v779 = vmul.f32 %v763, %v763
        %v780 = vmul.f32 %v764, %v764
        %v781 = vmul.f32 %v765, %v765
        %v782 = vmul.f32 %v766, %v766
        %v783 = vmul.f32 %v767, %v767
        %v784 = vmul.f32 %v768, %v768
        %v785 = vadd.f32 %v669, %v769
        %v786 = vadd.f32 %v670, %v770
        %v787 = vadd.f32 %v671, %v771
        %v788 = vadd.f32 %v672, %v772
        %v789 = vadd.f32 %v673, %v773
        %v790 = vadd.f32 %v674, %v774
        %v791 = vadd.f32 %v675, %v775
        %v792 = vadd.f32 %v676, %v776
        %v793 = vadd.f32 %v677, %v777
        %v794 = vadd.f32 %v678, %v778
        %v795 = vadd.f32 %v679, %v779
        %v796 = vadd.f32 %v680, %v780
        %v797 = vadd.f32 %v681, %v781
        %v798 = vadd.f32 %v682, %v782
        %v799 = vadd.f32 %v683, %v783
        %v800 = vadd.f32 %v684, %v784
        %v801 = vlaneseq
        %v802 = vand.u32 %v801, 127
        %vm803 = vcmask 523264
        %v804 = vsel %vm803, %v785, inf
        %805 = vmin.xlane.f32.xlu0 %v804
        %v806 = vpop.xlane.xlu0 %805
        %v807 = vsel %vm803, %v786, inf
        %808 = vmin.xlane.f32.xlu0 %v807
        %v809 = vpop.xlane.xlu0 %808
        %v810 = vsel %vm803, %v787, inf
        %811 = vmin.xlane.f32.xlu0 %v810
        %v812 = vpop.xlane.xlu0 %811
        %v813 = vsel %vm803, %v788, inf
        %814 = vmin.xlane.f32.xlu0 %v813
        %v815 = vpop.xlane.xlu0 %814
        %v816 = vsel %vm803, %v789, inf
        %817 = vmin.xlane.f32.xlu0 %v816
        %v818 = vpop.xlane.xlu0 %817
        %v819 = vsel %vm803, %v790, inf
        %820 = vmin.xlane.f32.xlu0 %v819
        %v821 = vpop.xlane.xlu0 %820
        %v822 = vsel %vm803, %v791, inf
        %823 = vmin.xlane.f32.xlu0 %v822
        %v824 = vpop.xlane.xlu0 %823
        %v825 = vsel %vm803, %v792, inf
        %826 = vmin.xlane.f32.xlu0 %v825
        %v827 = vpop.xlane.xlu0 %826
        %v828 = vsel %vm803, %v793, inf
        %829 = vmin.xlane.f32.xlu0 %v828
        %v830 = vpop.xlane.xlu0 %829
        %v831 = vsel %vm803, %v794, inf
        %832 = vmin.xlane.f32.xlu0 %v831
        %v833 = vpop.xlane.xlu0 %832
        %v834 = vsel %vm803, %v795, inf
        %835 = vmin.xlane.f32.xlu0 %v834
        %v836 = vpop.xlane.xlu0 %835
        %v837 = vsel %vm803, %v796, inf
        %838 = vmin.xlane.f32.xlu0 %v837
        %v839 = vpop.xlane.xlu0 %838
        %v840 = vsel %vm803, %v797, inf
        %841 = vmin.xlane.f32.xlu0 %v840
        %v842 = vpop.xlane.xlu0 %841
        %v843 = vsel %vm803, %v798, inf
        %844 = vmin.xlane.f32.xlu0 %v843
        %v845 = vpop.xlane.xlu0 %844
        %v846 = vsel %vm803, %v799, inf
        %847 = vmin.xlane.f32.xlu0 %v846
        %v848 = vpop.xlane.xlu0 %847
        %v849 = vsel %vm803, %v800, inf
        %850 = vmin.xlane.f32.xlu0 %v849
        %v851 = vpop.xlane.xlu0 %850
        %vm852 = vcmp.eq.f32.partialorder %v785, %v806
        %vm853 = vcmp.eq.f32.partialorder %v786, %v809
        %vm854 = vcmp.eq.f32.partialorder %v787, %v812
        %vm855 = vcmp.eq.f32.partialorder %v788, %v815
        %vm856 = vcmp.eq.f32.partialorder %v789, %v818
        %vm857 = vcmp.eq.f32.partialorder %v790, %v821
        %vm858 = vcmp.eq.f32.partialorder %v791, %v824
        %vm859 = vcmp.eq.f32.partialorder %v792, %v827
        %vm860 = vcmp.eq.f32.partialorder %v793, %v830
        %vm861 = vcmp.eq.f32.partialorder %v794, %v833
        %vm862 = vcmp.eq.f32.partialorder %v795, %v836
        %vm863 = vcmp.eq.f32.partialorder %v796, %v839
        %vm864 = vcmp.eq.f32.partialorder %v797, %v842
        %vm865 = vcmp.eq.f32.partialorder %v798, %v845
        %vm866 = vcmp.eq.f32.partialorder %v799, %v848
        %vm867 = vcmp.eq.f32.partialorder %v800, %v851
        %v868 = vsel %vm852, %v802, 64
        %v869 = vsel %vm853, %v802, 64
        %v870 = vsel %vm854, %v802, 64
        %v871 = vsel %vm855, %v802, 64
        %v872 = vsel %vm856, %v802, 64
        %v873 = vsel %vm857, %v802, 64
        %v874 = vsel %vm858, %v802, 64
        %v875 = vsel %vm859, %v802, 64
        %v876 = vsel %vm860, %v802, 64
        %v877 = vsel %vm861, %v802, 64
        %v878 = vsel %vm862, %v802, 64
        %v879 = vsel %vm863, %v802, 64
        %v880 = vsel %vm864, %v802, 64
        %v881 = vsel %vm865, %v802, 64
        %v882 = vsel %vm866, %v802, 64
        %v883 = vsel %vm867, %v802, 64
        %v884 = vsel %vm803, %v868, 2147483647
        %v885 = vand.u32 %v884, 65535
        %v886 = vshra.s32 %v884, 16
        %v887 = vcvt.s32.f32 %v885
        %v888 = vcvt.s32.f32 %v886
        %889 = vmin.xlane.f32.xlu0 %v888
        %v890 = vpop.xlane.xlu0 %889
        %vm891 = vcmp.eq.f32.partialorder %v888, %v890
        %v892 = vsel %vm891, %v887, inf
        %893 = vmin.xlane.f32.xlu0 %v892
        %v894 = vpop.xlane.xlu0 %893
        %v895 = vcvt.f32.s32 %v894
        %v896 = vcvt.f32.s32 %v890
        %v897 = vshll.u32 %v896, 16
        %v898 = vadd.s32 %v897, %v895
        %v899 = vsel %vm803, %v869, 2147483647
        %v900 = vand.u32 %v899, 65535
        %v901 = vshra.s32 %v899, 16
        %v902 = vcvt.s32.f32 %v900
        %v903 = vcvt.s32.f32 %v901
        %904 = vmin.xlane.f32.xlu0 %v903
        %v905 = vpop.xlane.xlu0 %904
        %vm906 = vcmp.eq.f32.partialorder %v903, %v905
        %v907 = vsel %vm906, %v902, inf
        %908 = vmin.xlane.f32.xlu0 %v907
        %v909 = vpop.xlane.xlu0 %908
        %v910 = vcvt.f32.s32 %v909
        %v911 = vcvt.f32.s32 %v905
        %v912 = vshll.u32 %v911, 16
        %v913 = vadd.s32 %v912, %v910
        %v914 = vsel %vm803, %v870, 2147483647
        %v915 = vand.u32 %v914, 65535
        %v916 = vshra.s32 %v914, 16
        %v917 = vcvt.s32.f32 %v915
        %v918 = vcvt.s32.f32 %v916
        %919 = vmin.xlane.f32.xlu0 %v918
        %v920 = vpop.xlane.xlu0 %919
        %vm921 = vcmp.eq.f32.partialorder %v918, %v920
        %v922 = vsel %vm921, %v917, inf
        %923 = vmin.xlane.f32.xlu0 %v922
        %v924 = vpop.xlane.xlu0 %923
        %v925 = vcvt.f32.s32 %v924
        %v926 = vcvt.f32.s32 %v920
        %v927 = vshll.u32 %v926, 16
        %v928 = vadd.s32 %v927, %v925
        %v929 = vsel %vm803, %v871, 2147483647
        %v930 = vand.u32 %v929, 65535
        %v931 = vshra.s32 %v929, 16
        %v932 = vcvt.s32.f32 %v930
        %v933 = vcvt.s32.f32 %v931
        %934 = vmin.xlane.f32.xlu0 %v933
        %v935 = vpop.xlane.xlu0 %934
        %vm936 = vcmp.eq.f32.partialorder %v933, %v935
        %v937 = vsel %vm936, %v932, inf
        %938 = vmin.xlane.f32.xlu0 %v937
        %v939 = vpop.xlane.xlu0 %938
        %v940 = vcvt.f32.s32 %v939
        %v941 = vcvt.f32.s32 %v935
        %v942 = vshll.u32 %v941, 16
        %v943 = vadd.s32 %v942, %v940
        %v944 = vsel %vm803, %v872, 2147483647
        %v945 = vand.u32 %v944, 65535
        %v946 = vshra.s32 %v944, 16
        %v947 = vcvt.s32.f32 %v945
        %v948 = vcvt.s32.f32 %v946
        %949 = vmin.xlane.f32.xlu0 %v948
        %v950 = vpop.xlane.xlu0 %949
        %vm951 = vcmp.eq.f32.partialorder %v948, %v950
        %v952 = vsel %vm951, %v947, inf
        %953 = vmin.xlane.f32.xlu0 %v952
        %v954 = vpop.xlane.xlu0 %953
        %v955 = vcvt.f32.s32 %v954
        %v956 = vcvt.f32.s32 %v950
        %v957 = vshll.u32 %v956, 16
        %v958 = vadd.s32 %v957, %v955
        %v959 = vsel %vm803, %v873, 2147483647
        %v960 = vand.u32 %v959, 65535
        %v961 = vshra.s32 %v959, 16
        %v962 = vcvt.s32.f32 %v960
        %v963 = vcvt.s32.f32 %v961
        %964 = vmin.xlane.f32.xlu0 %v963
        %v965 = vpop.xlane.xlu0 %964
        %vm966 = vcmp.eq.f32.partialorder %v963, %v965
        %v967 = vsel %vm966, %v962, inf
        %968 = vmin.xlane.f32.xlu0 %v967
        %v969 = vpop.xlane.xlu0 %968
        %v970 = vcvt.f32.s32 %v969
        %v971 = vcvt.f32.s32 %v965
        %v972 = vshll.u32 %v971, 16
        %v973 = vadd.s32 %v972, %v970
        %v974 = vsel %vm803, %v874, 2147483647
        %v975 = vand.u32 %v974, 65535
        %v976 = vshra.s32 %v974, 16
        %v977 = vcvt.s32.f32 %v975
        %v978 = vcvt.s32.f32 %v976
        %979 = vmin.xlane.f32.xlu0 %v978
        %v980 = vpop.xlane.xlu0 %979
        %vm981 = vcmp.eq.f32.partialorder %v978, %v980
        %v982 = vsel %vm981, %v977, inf
        %983 = vmin.xlane.f32.xlu0 %v982
        %v984 = vpop.xlane.xlu0 %983
        %v985 = vcvt.f32.s32 %v984
        %v986 = vcvt.f32.s32 %v980
        %v987 = vshll.u32 %v986, 16
        %v988 = vadd.s32 %v987, %v985
        %v989 = vsel %vm803, %v875, 2147483647
        %v990 = vand.u32 %v989, 65535
        %v991 = vshra.s32 %v989, 16
        %v992 = vcvt.s32.f32 %v990
        %v993 = vcvt.s32.f32 %v991
        %994 = vmin.xlane.f32.xlu0 %v993
        %v995 = vpop.xlane.xlu0 %994
        %vm996 = vcmp.eq.f32.partialorder %v993, %v995
        %v997 = vsel %vm996, %v992, inf
        %998 = vmin.xlane.f32.xlu0 %v997
        %v999 = vpop.xlane.xlu0 %998
        %v1000 = vcvt.f32.s32 %v999
        %v1001 = vcvt.f32.s32 %v995
        %v1002 = vshll.u32 %v1001, 16
        %v1003 = vadd.s32 %v1002, %v1000
        %v1004 = vsel %vm803, %v876, 2147483647
        %v1005 = vand.u32 %v1004, 65535
        %v1006 = vshra.s32 %v1004, 16
        %v1007 = vcvt.s32.f32 %v1005
        %v1008 = vcvt.s32.f32 %v1006
        %1009 = vmin.xlane.f32.xlu0 %v1008
        %v1010 = vpop.xlane.xlu0 %1009
        %vm1011 = vcmp.eq.f32.partialorder %v1008, %v1010
        %v1012 = vsel %vm1011, %v1007, inf
        %1013 = vmin.xlane.f32.xlu0 %v1012
        %v1014 = vpop.xlane.xlu0 %1013
        %v1015 = vcvt.f32.s32 %v1014
        %v1016 = vcvt.f32.s32 %v1010
        %v1017 = vshll.u32 %v1016, 16
        %v1018 = vadd.s32 %v1017, %v1015
        %v1019 = vsel %vm803, %v877, 2147483647
        %v1020 = vand.u32 %v1019, 65535
        %v1021 = vshra.s32 %v1019, 16
        %v1022 = vcvt.s32.f32 %v1020
        %v1023 = vcvt.s32.f32 %v1021
        %1024 = vmin.xlane.f32.xlu0 %v1023
        %v1025 = vpop.xlane.xlu0 %1024
        %vm1026 = vcmp.eq.f32.partialorder %v1023, %v1025
        %v1027 = vsel %vm1026, %v1022, inf
        %1028 = vmin.xlane.f32.xlu0 %v1027
        %v1029 = vpop.xlane.xlu0 %1028
        %v1030 = vcvt.f32.s32 %v1029
        %v1031 = vcvt.f32.s32 %v1025
        %v1032 = vshll.u32 %v1031, 16
        %v1033 = vadd.s32 %v1032, %v1030
        %v1034 = vsel %vm803, %v878, 2147483647
        %v1035 = vand.u32 %v1034, 65535
        %v1036 = vshra.s32 %v1034, 16
        %v1037 = vcvt.s32.f32 %v1035
        %v1038 = vcvt.s32.f32 %v1036
        %1039 = vmin.xlane.f32.xlu0 %v1038
        %v1040 = vpop.xlane.xlu0 %1039
        %vm1041 = vcmp.eq.f32.partialorder %v1038, %v1040
        %v1042 = vsel %vm1041, %v1037, inf
        %1043 = vmin.xlane.f32.xlu0 %v1042
        %v1044 = vpop.xlane.xlu0 %1043
        %v1045 = vcvt.f32.s32 %v1044
        %v1046 = vcvt.f32.s32 %v1040
        %v1047 = vshll.u32 %v1046, 16
        %v1048 = vadd.s32 %v1047, %v1045
        %v1049 = vsel %vm803, %v879, 2147483647
        %v1050 = vand.u32 %v1049, 65535
        %v1051 = vshra.s32 %v1049, 16
        %v1052 = vcvt.s32.f32 %v1050
        %v1053 = vcvt.s32.f32 %v1051
        %1054 = vmin.xlane.f32.xlu0 %v1053
        %v1055 = vpop.xlane.xlu0 %1054
        %vm1056 = vcmp.eq.f32.partialorder %v1053, %v1055
        %v1057 = vsel %vm1056, %v1052, inf
        %1058 = vmin.xlane.f32.xlu0 %v1057
        %v1059 = vpop.xlane.xlu0 %1058
        %v1060 = vcvt.f32.s32 %v1059
        %v1061 = vcvt.f32.s32 %v1055
        %v1062 = vshll.u32 %v1061, 16
        %v1063 = vadd.s32 %v1062, %v1060
        %v1064 = vsel %vm803, %v880, 2147483647
        %v1065 = vand.u32 %v1064, 65535
        %v1066 = vshra.s32 %v1064, 16
        %v1067 = vcvt.s32.f32 %v1065
        %v1068 = vcvt.s32.f32 %v1066
        %1069 = vmin.xlane.f32.xlu0 %v1068
        %v1070 = vpop.xlane.xlu0 %1069
        %vm1071 = vcmp.eq.f32.partialorder %v1068, %v1070
        %v1072 = vsel %vm1071, %v1067, inf
        %1073 = vmin.xlane.f32.xlu0 %v1072
        %v1074 = vpop.xlane.xlu0 %1073
        %v1075 = vcvt.f32.s32 %v1074
        %v1076 = vcvt.f32.s32 %v1070
        %v1077 = vshll.u32 %v1076, 16
        %v1078 = vadd.s32 %v1077, %v1075
        %v1079 = vsel %vm803, %v881, 2147483647
        %v1080 = vand.u32 %v1079, 65535
        %v1081 = vshra.s32 %v1079, 16
        %v1082 = vcvt.s32.f32 %v1080
        %v1083 = vcvt.s32.f32 %v1081
        %1084 = vmin.xlane.f32.xlu0 %v1083
        %v1085 = vpop.xlane.xlu0 %1084
        %vm1086 = vcmp.eq.f32.partialorder %v1083, %v1085
        %v1087 = vsel %vm1086, %v1082, inf
        %1088 = vmin.xlane.f32.xlu0 %v1087
        %v1089 = vpop.xlane.xlu0 %1088
        %v1090 = vcvt.f32.s32 %v1089
        %v1091 = vcvt.f32.s32 %v1085
        %v1092 = vshll.u32 %v1091, 16
        %v1093 = vadd.s32 %v1092, %v1090
        %v1094 = vsel %vm803, %v882, 2147483647
        %v1095 = vand.u32 %v1094, 65535
        %v1096 = vshra.s32 %v1094, 16
        %v1097 = vcvt.s32.f32 %v1095
        %v1098 = vcvt.s32.f32 %v1096
        %1099 = vmin.xlane.f32.xlu0 %v1098
        %v1100 = vpop.xlane.xlu0 %1099
        %vm1101 = vcmp.eq.f32.partialorder %v1098, %v1100
        %v1102 = vsel %vm1101, %v1097, inf
        %1103 = vmin.xlane.f32.xlu0 %v1102
        %v1104 = vpop.xlane.xlu0 %1103
        %v1105 = vcvt.f32.s32 %v1104
        %v1106 = vcvt.f32.s32 %v1100
        %v1107 = vshll.u32 %v1106, 16
        %v1108 = vadd.s32 %v1107, %v1105
        %v1109 = vsel %vm803, %v883, 2147483647
        %v1110 = vand.u32 %v1109, 65535
        %v1111 = vshra.s32 %v1109, 16
        %v1112 = vcvt.s32.f32 %v1110
        %v1113 = vcvt.s32.f32 %v1111
        %1114 = vmin.xlane.f32.xlu0 %v1113
        %v1115 = vpop.xlane.xlu0 %1114
        %vm1116 = vcmp.eq.f32.partialorder %v1113, %v1115
        %v1117 = vsel %vm1116, %v1112, inf
        %1118 = vmin.xlane.f32.xlu0 %v1117
        %v1119 = vpop.xlane.xlu0 %1118
        %v1120 = vcvt.f32.s32 %v1119
        %v1121 = vcvt.f32.s32 %v1115
        %v1122 = vshll.u32 %v1121, 16
        %v1123 = vadd.s32 %v1122, %v1120
        %vm1124 = vcmp.eq.s32.totalorder %v802, %v898
        %vm1125 = vcmp.eq.s32.totalorder %v802, %v913
        %vm1126 = vcmp.eq.s32.totalorder %v802, %v928
        %vm1127 = vcmp.eq.s32.totalorder %v802, %v943
        %vm1128 = vcmp.eq.s32.totalorder %v802, %v958
        %vm1129 = vcmp.eq.s32.totalorder %v802, %v973
        %vm1130 = vcmp.eq.s32.totalorder %v802, %v988
        %vm1131 = vcmp.eq.s32.totalorder %v802, %v1003
        %vm1132 = vcmp.eq.s32.totalorder %v802, %v1018
        %vm1133 = vcmp.eq.s32.totalorder %v802, %v1033
        %vm1134 = vcmp.eq.s32.totalorder %v802, %v1048
        %vm1135 = vcmp.eq.s32.totalorder %v802, %v1063
        %vm1136 = vcmp.eq.s32.totalorder %v802, %v1078
        %vm1137 = vcmp.eq.s32.totalorder %v802, %v1093
        %vm1138 = vcmp.eq.s32.totalorder %v802, %v1108
        %vm1139 = vcmp.eq.s32.totalorder %v802, %v1123
        %v1140 = vadd.f32 %v806, 1e-08
        %v1141 = vadd.f32 %v809, 1e-08
        %v1142 = vadd.f32 %v812, 1e-08
        %v1143 = vadd.f32 %v815, 1e-08
        %v1144 = vadd.f32 %v818, 1e-08
        %v1145 = vadd.f32 %v821, 1e-08
        %v1146 = vadd.f32 %v824, 1e-08
        %v1147 = vadd.f32 %v827, 1e-08
        %v1148 = vadd.f32 %v830, 1e-08
        %v1149 = vadd.f32 %v833, 1e-08
        %v1150 = vadd.f32 %v836, 1e-08
        %v1151 = vadd.f32 %v839, 1e-08
        %v1152 = vadd.f32 %v842, 1e-08
        %v1153 = vadd.f32 %v845, 1e-08
        %v1154 = vadd.f32 %v848, 1e-08
        %v1155 = vadd.f32 %v851, 1e-08
        %v1156 = vrcp.pop %v1140
        %v1157 = vmul.f32 1.0, %v1156
        %v1158 = vrcp.pop %v1141
        %v1159 = vmul.f32 1.0, %v1158
        %v1160 = vrcp.pop %v1142
        %v1161 = vmul.f32 1.0, %v1160
        %v1162 = vrcp.pop %v1143
        %v1163 = vmul.f32 1.0, %v1162
        %v1164 = vrcp.pop %v1144
        %v1165 = vmul.f32 1.0, %v1164
        %v1166 = vrcp.pop %v1145
        %v1167 = vmul.f32 1.0, %v1166
        %v1168 = vrcp.pop %v1146
        %v1169 = vmul.f32 1.0, %v1168
        %v1170 = vrcp.pop %v1147
        %v1171 = vmul.f32 1.0, %v1170
        %v1172 = vrcp.pop %v1148
        %v1173 = vmul.f32 1.0, %v1172
        %v1174 = vrcp.pop %v1149
        %v1175 = vmul.f32 1.0, %v1174
        %v1176 = vrcp.pop %v1150
        %v1177 = vmul.f32 1.0, %v1176
        %v1178 = vrcp.pop %v1151
        %v1179 = vmul.f32 1.0, %v1178
        %v1180 = vrcp.pop %v1152
        %v1181 = vmul.f32 1.0, %v1180
        %v1182 = vrcp.pop %v1153
        %v1183 = vmul.f32 1.0, %v1182
        %v1184 = vrcp.pop %v1154
        %v1185 = vmul.f32 1.0, %v1184
        %v1186 = vrcp.pop %v1155
        %v1187 = vmul.f32 1.0, %v1186
        %v1188 = vsel %vm1124, %v1157, 0.0
        %v1189 = vsel %vm1125, %v1159, 0.0
        %v1190 = vsel %vm1126, %v1161, 0.0
        %v1191 = vsel %vm1127, %v1163, 0.0
        %v1192 = vsel %vm1128, %v1165, 0.0
        %v1193 = vsel %vm1129, %v1167, 0.0
        %v1194 = vsel %vm1130, %v1169, 0.0
        %v1195 = vsel %vm1131, %v1171, 0.0
        %v1196 = vsel %vm1132, %v1173, 0.0
        %v1197 = vsel %vm1133, %v1175, 0.0
        %v1198 = vsel %vm1134, %v1177, 0.0
        %v1199 = vsel %vm1135, %v1179, 0.0
        %v1200 = vsel %vm1136, %v1181, 0.0
        %v1201 = vsel %vm1137, %v1183, 0.0
        %v1202 = vsel %vm1138, %v1185, 0.0
        %v1203 = vsel %vm1139, %v1187, 0.0
        %v1204 = vsel %vm1124, 3e+38, %v785
        %v1205 = vsel %vm1125, 3e+38, %v786
        %v1206 = vsel %vm1126, 3e+38, %v787
        %v1207 = vsel %vm1127, 3e+38, %v788
        %v1208 = vsel %vm1128, 3e+38, %v789
        %v1209 = vsel %vm1129, 3e+38, %v790
        %v1210 = vsel %vm1130, 3e+38, %v791
        %v1211 = vsel %vm1131, 3e+38, %v792
        %v1212 = vsel %vm1132, 3e+38, %v793
        %v1213 = vsel %vm1133, 3e+38, %v794
        %v1214 = vsel %vm1134, 3e+38, %v795
        %v1215 = vsel %vm1135, 3e+38, %v796
        %v1216 = vsel %vm1136, 3e+38, %v797
        %v1217 = vsel %vm1137, 3e+38, %v798
        %v1218 = vsel %vm1138, 3e+38, %v799
        %v1219 = vsel %vm1139, 3e+38, %v800
        %v1220 = vsel %vm803, %v1204, inf
        %1221 = vmin.xlane.f32.xlu0 %v1220
        %v1222 = vpop.xlane.xlu0 %1221
        %v1223 = vsel %vm803, %v1205, inf
        %1224 = vmin.xlane.f32.xlu0 %v1223
        %v1225 = vpop.xlane.xlu0 %1224
        %v1226 = vsel %vm803, %v1206, inf
        %1227 = vmin.xlane.f32.xlu0 %v1226
        %v1228 = vpop.xlane.xlu0 %1227
        %v1229 = vsel %vm803, %v1207, inf
        %1230 = vmin.xlane.f32.xlu0 %v1229
        %v1231 = vpop.xlane.xlu0 %1230
        %v1232 = vsel %vm803, %v1208, inf
        %1233 = vmin.xlane.f32.xlu0 %v1232
        %v1234 = vpop.xlane.xlu0 %1233
        %v1235 = vsel %vm803, %v1209, inf
        %1236 = vmin.xlane.f32.xlu0 %v1235
        %v1237 = vpop.xlane.xlu0 %1236
        %v1238 = vsel %vm803, %v1210, inf
        %1239 = vmin.xlane.f32.xlu0 %v1238
        %v1240 = vpop.xlane.xlu0 %1239
        %v1241 = vsel %vm803, %v1211, inf
        %1242 = vmin.xlane.f32.xlu0 %v1241
        %v1243 = vpop.xlane.xlu0 %1242
        %v1244 = vsel %vm803, %v1212, inf
        %1245 = vmin.xlane.f32.xlu0 %v1244
        %v1246 = vpop.xlane.xlu0 %1245
        %v1247 = vsel %vm803, %v1213, inf
        %1248 = vmin.xlane.f32.xlu0 %v1247
        %v1249 = vpop.xlane.xlu0 %1248
        %v1250 = vsel %vm803, %v1214, inf
        %1251 = vmin.xlane.f32.xlu0 %v1250
        %v1252 = vpop.xlane.xlu0 %1251
        %v1253 = vsel %vm803, %v1215, inf
        %1254 = vmin.xlane.f32.xlu0 %v1253
        %v1255 = vpop.xlane.xlu0 %1254
        %v1256 = vsel %vm803, %v1216, inf
        %1257 = vmin.xlane.f32.xlu0 %v1256
        %v1258 = vpop.xlane.xlu0 %1257
        %v1259 = vsel %vm803, %v1217, inf
        %1260 = vmin.xlane.f32.xlu0 %v1259
        %v1261 = vpop.xlane.xlu0 %1260
        %v1262 = vsel %vm803, %v1218, inf
        %1263 = vmin.xlane.f32.xlu0 %v1262
        %v1264 = vpop.xlane.xlu0 %1263
        %v1265 = vsel %vm803, %v1219, inf
        %1266 = vmin.xlane.f32.xlu0 %v1265
        %v1267 = vpop.xlane.xlu0 %1266
        %vm1268 = vcmp.eq.f32.partialorder %v1204, %v1222
        %vm1269 = vcmp.eq.f32.partialorder %v1205, %v1225
        %vm1270 = vcmp.eq.f32.partialorder %v1206, %v1228
        %vm1271 = vcmp.eq.f32.partialorder %v1207, %v1231
        %vm1272 = vcmp.eq.f32.partialorder %v1208, %v1234
        %vm1273 = vcmp.eq.f32.partialorder %v1209, %v1237
        %vm1274 = vcmp.eq.f32.partialorder %v1210, %v1240
        %vm1275 = vcmp.eq.f32.partialorder %v1211, %v1243
        %vm1276 = vcmp.eq.f32.partialorder %v1212, %v1246
        %vm1277 = vcmp.eq.f32.partialorder %v1213, %v1249
        %vm1278 = vcmp.eq.f32.partialorder %v1214, %v1252
        %vm1279 = vcmp.eq.f32.partialorder %v1215, %v1255
        %vm1280 = vcmp.eq.f32.partialorder %v1216, %v1258
        %vm1281 = vcmp.eq.f32.partialorder %v1217, %v1261
        %vm1282 = vcmp.eq.f32.partialorder %v1218, %v1264
        %vm1283 = vcmp.eq.f32.partialorder %v1219, %v1267
        %v1284 = vsel %vm1268, %v802, 64
        %v1285 = vsel %vm1269, %v802, 64
        %v1286 = vsel %vm1270, %v802, 64
        %v1287 = vsel %vm1271, %v802, 64
        %v1288 = vsel %vm1272, %v802, 64
        %v1289 = vsel %vm1273, %v802, 64
        %v1290 = vsel %vm1274, %v802, 64
        %v1291 = vsel %vm1275, %v802, 64
        %v1292 = vsel %vm1276, %v802, 64
        %v1293 = vsel %vm1277, %v802, 64
        %v1294 = vsel %vm1278, %v802, 64
        %v1295 = vsel %vm1279, %v802, 64
        %v1296 = vsel %vm1280, %v802, 64
        %v1297 = vsel %vm1281, %v802, 64
        %v1298 = vsel %vm1282, %v802, 64
        %v1299 = vsel %vm1283, %v802, 64
        %v1300 = vsel %vm803, %v1284, 2147483647
        %v1301 = vand.u32 %v1300, 65535
        %v1302 = vshra.s32 %v1300, 16
        %v1303 = vcvt.s32.f32 %v1301
        %v1304 = vcvt.s32.f32 %v1302
        %1305 = vmin.xlane.f32.xlu0 %v1304
        %v1306 = vpop.xlane.xlu0 %1305
        %vm1307 = vcmp.eq.f32.partialorder %v1304, %v1306
        %v1308 = vsel %vm1307, %v1303, inf
        %1309 = vmin.xlane.f32.xlu0 %v1308
        %v1310 = vpop.xlane.xlu0 %1309
        %v1311 = vcvt.f32.s32 %v1310
        %v1312 = vcvt.f32.s32 %v1306
        %v1313 = vshll.u32 %v1312, 16
        %v1314 = vadd.s32 %v1313, %v1311
        %v1315 = vsel %vm803, %v1285, 2147483647
        %v1316 = vand.u32 %v1315, 65535
        %v1317 = vshra.s32 %v1315, 16
        %v1318 = vcvt.s32.f32 %v1316
        %v1319 = vcvt.s32.f32 %v1317
        %1320 = vmin.xlane.f32.xlu0 %v1319
        %v1321 = vpop.xlane.xlu0 %1320
        %vm1322 = vcmp.eq.f32.partialorder %v1319, %v1321
        %v1323 = vsel %vm1322, %v1318, inf
        %1324 = vmin.xlane.f32.xlu0 %v1323
        %v1325 = vpop.xlane.xlu0 %1324
        %v1326 = vcvt.f32.s32 %v1325
        %v1327 = vcvt.f32.s32 %v1321
        %v1328 = vshll.u32 %v1327, 16
        %v1329 = vadd.s32 %v1328, %v1326
        %v1330 = vsel %vm803, %v1286, 2147483647
        %v1331 = vand.u32 %v1330, 65535
        %v1332 = vshra.s32 %v1330, 16
        %v1333 = vcvt.s32.f32 %v1331
        %v1334 = vcvt.s32.f32 %v1332
        %1335 = vmin.xlane.f32.xlu0 %v1334
        %v1336 = vpop.xlane.xlu0 %1335
        %vm1337 = vcmp.eq.f32.partialorder %v1334, %v1336
        %v1338 = vsel %vm1337, %v1333, inf
        %1339 = vmin.xlane.f32.xlu0 %v1338
        %v1340 = vpop.xlane.xlu0 %1339
        %v1341 = vcvt.f32.s32 %v1340
        %v1342 = vcvt.f32.s32 %v1336
        %v1343 = vshll.u32 %v1342, 16
        %v1344 = vadd.s32 %v1343, %v1341
        %v1345 = vsel %vm803, %v1287, 2147483647
        %v1346 = vand.u32 %v1345, 65535
        %v1347 = vshra.s32 %v1345, 16
        %v1348 = vcvt.s32.f32 %v1346
        %v1349 = vcvt.s32.f32 %v1347
        %1350 = vmin.xlane.f32.xlu0 %v1349
        %v1351 = vpop.xlane.xlu0 %1350
        %vm1352 = vcmp.eq.f32.partialorder %v1349, %v1351
        %v1353 = vsel %vm1352, %v1348, inf
        %1354 = vmin.xlane.f32.xlu0 %v1353
        %v1355 = vpop.xlane.xlu0 %1354
        %v1356 = vcvt.f32.s32 %v1355
        %v1357 = vcvt.f32.s32 %v1351
        %v1358 = vshll.u32 %v1357, 16
        %v1359 = vadd.s32 %v1358, %v1356
        %v1360 = vsel %vm803, %v1288, 2147483647
        %v1361 = vand.u32 %v1360, 65535
        %v1362 = vshra.s32 %v1360, 16
        %v1363 = vcvt.s32.f32 %v1361
        %v1364 = vcvt.s32.f32 %v1362
        %1365 = vmin.xlane.f32.xlu0 %v1364
        %v1366 = vpop.xlane.xlu0 %1365
        %vm1367 = vcmp.eq.f32.partialorder %v1364, %v1366
        %v1368 = vsel %vm1367, %v1363, inf
        %1369 = vmin.xlane.f32.xlu0 %v1368
        %v1370 = vpop.xlane.xlu0 %1369
        %v1371 = vcvt.f32.s32 %v1370
        %v1372 = vcvt.f32.s32 %v1366
        %v1373 = vshll.u32 %v1372, 16
        %v1374 = vadd.s32 %v1373, %v1371
        %v1375 = vsel %vm803, %v1289, 2147483647
        %v1376 = vand.u32 %v1375, 65535
        %v1377 = vshra.s32 %v1375, 16
        %v1378 = vcvt.s32.f32 %v1376
        %v1379 = vcvt.s32.f32 %v1377
        %1380 = vmin.xlane.f32.xlu0 %v1379
        %v1381 = vpop.xlane.xlu0 %1380
        %vm1382 = vcmp.eq.f32.partialorder %v1379, %v1381
        %v1383 = vsel %vm1382, %v1378, inf
        %1384 = vmin.xlane.f32.xlu0 %v1383
        %v1385 = vpop.xlane.xlu0 %1384
        %v1386 = vcvt.f32.s32 %v1385
        %v1387 = vcvt.f32.s32 %v1381
        %v1388 = vshll.u32 %v1387, 16
        %v1389 = vadd.s32 %v1388, %v1386
        %v1390 = vsel %vm803, %v1290, 2147483647
        %v1391 = vand.u32 %v1390, 65535
        %v1392 = vshra.s32 %v1390, 16
        %v1393 = vcvt.s32.f32 %v1391
        %v1394 = vcvt.s32.f32 %v1392
        %1395 = vmin.xlane.f32.xlu0 %v1394
        %v1396 = vpop.xlane.xlu0 %1395
        %vm1397 = vcmp.eq.f32.partialorder %v1394, %v1396
        %v1398 = vsel %vm1397, %v1393, inf
        %1399 = vmin.xlane.f32.xlu0 %v1398
        %v1400 = vpop.xlane.xlu0 %1399
        %v1401 = vcvt.f32.s32 %v1400
        %v1402 = vcvt.f32.s32 %v1396
        %v1403 = vshll.u32 %v1402, 16
        %v1404 = vadd.s32 %v1403, %v1401
        %v1405 = vsel %vm803, %v1291, 2147483647
        %v1406 = vand.u32 %v1405, 65535
        %v1407 = vshra.s32 %v1405, 16
        %v1408 = vcvt.s32.f32 %v1406
        %v1409 = vcvt.s32.f32 %v1407
        %1410 = vmin.xlane.f32.xlu0 %v1409
        %v1411 = vpop.xlane.xlu0 %1410
        %vm1412 = vcmp.eq.f32.partialorder %v1409, %v1411
        %v1413 = vsel %vm1412, %v1408, inf
        %1414 = vmin.xlane.f32.xlu0 %v1413
        %v1415 = vpop.xlane.xlu0 %1414
        %v1416 = vcvt.f32.s32 %v1415
        %v1417 = vcvt.f32.s32 %v1411
        %v1418 = vshll.u32 %v1417, 16
        %v1419 = vadd.s32 %v1418, %v1416
        %v1420 = vsel %vm803, %v1292, 2147483647
        %v1421 = vand.u32 %v1420, 65535
        %v1422 = vshra.s32 %v1420, 16
        %v1423 = vcvt.s32.f32 %v1421
        %v1424 = vcvt.s32.f32 %v1422
        %1425 = vmin.xlane.f32.xlu0 %v1424
        %v1426 = vpop.xlane.xlu0 %1425
        %vm1427 = vcmp.eq.f32.partialorder %v1424, %v1426
        %v1428 = vsel %vm1427, %v1423, inf
        %1429 = vmin.xlane.f32.xlu0 %v1428
        %v1430 = vpop.xlane.xlu0 %1429
        %v1431 = vcvt.f32.s32 %v1430
        %v1432 = vcvt.f32.s32 %v1426
        %v1433 = vshll.u32 %v1432, 16
        %v1434 = vadd.s32 %v1433, %v1431
        %v1435 = vsel %vm803, %v1293, 2147483647
        %v1436 = vand.u32 %v1435, 65535
        %v1437 = vshra.s32 %v1435, 16
        %v1438 = vcvt.s32.f32 %v1436
        %v1439 = vcvt.s32.f32 %v1437
        %1440 = vmin.xlane.f32.xlu0 %v1439
        %v1441 = vpop.xlane.xlu0 %1440
        %vm1442 = vcmp.eq.f32.partialorder %v1439, %v1441
        %v1443 = vsel %vm1442, %v1438, inf
        %1444 = vmin.xlane.f32.xlu0 %v1443
        %v1445 = vpop.xlane.xlu0 %1444
        %v1446 = vcvt.f32.s32 %v1445
        %v1447 = vcvt.f32.s32 %v1441
        %v1448 = vshll.u32 %v1447, 16
        %v1449 = vadd.s32 %v1448, %v1446
        %v1450 = vsel %vm803, %v1294, 2147483647
        %v1451 = vand.u32 %v1450, 65535
        %v1452 = vshra.s32 %v1450, 16
        %v1453 = vcvt.s32.f32 %v1451
        %v1454 = vcvt.s32.f32 %v1452
        %1455 = vmin.xlane.f32.xlu0 %v1454
        %v1456 = vpop.xlane.xlu0 %1455
        %vm1457 = vcmp.eq.f32.partialorder %v1454, %v1456
        %v1458 = vsel %vm1457, %v1453, inf
        %1459 = vmin.xlane.f32.xlu0 %v1458
        %v1460 = vpop.xlane.xlu0 %1459
        %v1461 = vcvt.f32.s32 %v1460
        %v1462 = vcvt.f32.s32 %v1456
        %v1463 = vshll.u32 %v1462, 16
        %v1464 = vadd.s32 %v1463, %v1461
        %v1465 = vsel %vm803, %v1295, 2147483647
        %v1466 = vand.u32 %v1465, 65535
        %v1467 = vshra.s32 %v1465, 16
        %v1468 = vcvt.s32.f32 %v1466
        %v1469 = vcvt.s32.f32 %v1467
        %1470 = vmin.xlane.f32.xlu0 %v1469
        %v1471 = vpop.xlane.xlu0 %1470
        %vm1472 = vcmp.eq.f32.partialorder %v1469, %v1471
        %v1473 = vsel %vm1472, %v1468, inf
        %1474 = vmin.xlane.f32.xlu0 %v1473
        %v1475 = vpop.xlane.xlu0 %1474
        %v1476 = vcvt.f32.s32 %v1475
        %v1477 = vcvt.f32.s32 %v1471
        %v1478 = vshll.u32 %v1477, 16
        %v1479 = vadd.s32 %v1478, %v1476
        %v1480 = vsel %vm803, %v1296, 2147483647
        %v1481 = vand.u32 %v1480, 65535
        %v1482 = vshra.s32 %v1480, 16
        %v1483 = vcvt.s32.f32 %v1481
        %v1484 = vcvt.s32.f32 %v1482
        %1485 = vmin.xlane.f32.xlu0 %v1484
        %v1486 = vpop.xlane.xlu0 %1485
        %vm1487 = vcmp.eq.f32.partialorder %v1484, %v1486
        %v1488 = vsel %vm1487, %v1483, inf
        %1489 = vmin.xlane.f32.xlu0 %v1488
        %v1490 = vpop.xlane.xlu0 %1489
        %v1491 = vcvt.f32.s32 %v1490
        %v1492 = vcvt.f32.s32 %v1486
        %v1493 = vshll.u32 %v1492, 16
        %v1494 = vadd.s32 %v1493, %v1491
        %v1495 = vsel %vm803, %v1297, 2147483647
        %v1496 = vand.u32 %v1495, 65535
        %v1497 = vshra.s32 %v1495, 16
        %v1498 = vcvt.s32.f32 %v1496
        %v1499 = vcvt.s32.f32 %v1497
        %1500 = vmin.xlane.f32.xlu0 %v1499
        %v1501 = vpop.xlane.xlu0 %1500
        %vm1502 = vcmp.eq.f32.partialorder %v1499, %v1501
        %v1503 = vsel %vm1502, %v1498, inf
        %1504 = vmin.xlane.f32.xlu0 %v1503
        %v1505 = vpop.xlane.xlu0 %1504
        %v1506 = vcvt.f32.s32 %v1505
        %v1507 = vcvt.f32.s32 %v1501
        %v1508 = vshll.u32 %v1507, 16
        %v1509 = vadd.s32 %v1508, %v1506
        %v1510 = vsel %vm803, %v1298, 2147483647
        %v1511 = vand.u32 %v1510, 65535
        %v1512 = vshra.s32 %v1510, 16
        %v1513 = vcvt.s32.f32 %v1511
        %v1514 = vcvt.s32.f32 %v1512
        %1515 = vmin.xlane.f32.xlu0 %v1514
        %v1516 = vpop.xlane.xlu0 %1515
        %vm1517 = vcmp.eq.f32.partialorder %v1514, %v1516
        %v1518 = vsel %vm1517, %v1513, inf
        %1519 = vmin.xlane.f32.xlu0 %v1518
        %v1520 = vpop.xlane.xlu0 %1519
        %v1521 = vcvt.f32.s32 %v1520
        %v1522 = vcvt.f32.s32 %v1516
        %v1523 = vshll.u32 %v1522, 16
        %v1524 = vadd.s32 %v1523, %v1521
        %v1525 = vsel %vm803, %v1299, 2147483647
        %v1526 = vand.u32 %v1525, 65535
        %v1527 = vshra.s32 %v1525, 16
        %v1528 = vcvt.s32.f32 %v1526
        %v1529 = vcvt.s32.f32 %v1527
        %1530 = vmin.xlane.f32.xlu0 %v1529
        %v1531 = vpop.xlane.xlu0 %1530
        %vm1532 = vcmp.eq.f32.partialorder %v1529, %v1531
        %v1533 = vsel %vm1532, %v1528, inf
        %1534 = vmin.xlane.f32.xlu0 %v1533
        %v1535 = vpop.xlane.xlu0 %1534
        %v1536 = vcvt.f32.s32 %v1535
        %v1537 = vcvt.f32.s32 %v1531
        %v1538 = vshll.u32 %v1537, 16
        %v1539 = vadd.s32 %v1538, %v1536
        %vm1540 = vcmp.eq.s32.totalorder %v802, %v1314
        %vm1541 = vcmp.eq.s32.totalorder %v802, %v1329
        %vm1542 = vcmp.eq.s32.totalorder %v802, %v1344
        %vm1543 = vcmp.eq.s32.totalorder %v802, %v1359
        %vm1544 = vcmp.eq.s32.totalorder %v802, %v1374
        %vm1545 = vcmp.eq.s32.totalorder %v802, %v1389
        %vm1546 = vcmp.eq.s32.totalorder %v802, %v1404
        %vm1547 = vcmp.eq.s32.totalorder %v802, %v1419
        %vm1548 = vcmp.eq.s32.totalorder %v802, %v1434
        %vm1549 = vcmp.eq.s32.totalorder %v802, %v1449
        %vm1550 = vcmp.eq.s32.totalorder %v802, %v1464
        %vm1551 = vcmp.eq.s32.totalorder %v802, %v1479
        %vm1552 = vcmp.eq.s32.totalorder %v802, %v1494
        %vm1553 = vcmp.eq.s32.totalorder %v802, %v1509
        %vm1554 = vcmp.eq.s32.totalorder %v802, %v1524
        %vm1555 = vcmp.eq.s32.totalorder %v802, %v1539
        %v1556 = vadd.f32 %v1222, 1e-08
        %v1557 = vadd.f32 %v1225, 1e-08
        %v1558 = vadd.f32 %v1228, 1e-08
        %v1559 = vadd.f32 %v1231, 1e-08
        %v1560 = vadd.f32 %v1234, 1e-08
        %v1561 = vadd.f32 %v1237, 1e-08
        %v1562 = vadd.f32 %v1240, 1e-08
        %v1563 = vadd.f32 %v1243, 1e-08
        %v1564 = vadd.f32 %v1246, 1e-08
        %v1565 = vadd.f32 %v1249, 1e-08
        %v1566 = vadd.f32 %v1252, 1e-08
        %v1567 = vadd.f32 %v1255, 1e-08
        %v1568 = vadd.f32 %v1258, 1e-08
        %v1569 = vadd.f32 %v1261, 1e-08
        %v1570 = vadd.f32 %v1264, 1e-08
        %v1571 = vadd.f32 %v1267, 1e-08
        %v1572 = vrcp.pop %v1556
        %v1573 = vmul.f32 1.0, %v1572
        %v1574 = vrcp.pop %v1557
        %v1575 = vmul.f32 1.0, %v1574
        %v1576 = vrcp.pop %v1558
        %v1577 = vmul.f32 1.0, %v1576
        %v1578 = vrcp.pop %v1559
        %v1579 = vmul.f32 1.0, %v1578
        %v1580 = vrcp.pop %v1560
        %v1581 = vmul.f32 1.0, %v1580
        %v1582 = vrcp.pop %v1561
        %v1583 = vmul.f32 1.0, %v1582
        %v1584 = vrcp.pop %v1562
        %v1585 = vmul.f32 1.0, %v1584
        %v1586 = vrcp.pop %v1563
        %v1587 = vmul.f32 1.0, %v1586
        %v1588 = vrcp.pop %v1564
        %v1589 = vmul.f32 1.0, %v1588
        %v1590 = vrcp.pop %v1565
        %v1591 = vmul.f32 1.0, %v1590
        %v1592 = vrcp.pop %v1566
        %v1593 = vmul.f32 1.0, %v1592
        %v1594 = vrcp.pop %v1567
        %v1595 = vmul.f32 1.0, %v1594
        %v1596 = vrcp.pop %v1568
        %v1597 = vmul.f32 1.0, %v1596
        %v1598 = vrcp.pop %v1569
        %v1599 = vmul.f32 1.0, %v1598
        %v1600 = vrcp.pop %v1570
        %v1601 = vmul.f32 1.0, %v1600
        %v1602 = vrcp.pop %v1571
        %v1603 = vmul.f32 1.0, %v1602
        %v1604 = vsel %vm1540, %v1573, %v1188
        %v1605 = vsel %vm1541, %v1575, %v1189
        %v1606 = vsel %vm1542, %v1577, %v1190
        %v1607 = vsel %vm1543, %v1579, %v1191
        %v1608 = vsel %vm1544, %v1581, %v1192
        %v1609 = vsel %vm1545, %v1583, %v1193
        %v1610 = vsel %vm1546, %v1585, %v1194
        %v1611 = vsel %vm1547, %v1587, %v1195
        %v1612 = vsel %vm1548, %v1589, %v1196
        %v1613 = vsel %vm1549, %v1591, %v1197
        %v1614 = vsel %vm1550, %v1593, %v1198
        %v1615 = vsel %vm1551, %v1595, %v1199
        %v1616 = vsel %vm1552, %v1597, %v1200
        %v1617 = vsel %vm1553, %v1599, %v1201
        %v1618 = vsel %vm1554, %v1601, %v1202
        %v1619 = vsel %vm1555, %v1603, %v1203
        %v1620 = vsel %vm1540, 3e+38, %v1204
        %v1621 = vsel %vm1541, 3e+38, %v1205
        %v1622 = vsel %vm1542, 3e+38, %v1206
        %v1623 = vsel %vm1543, 3e+38, %v1207
        %v1624 = vsel %vm1544, 3e+38, %v1208
        %v1625 = vsel %vm1545, 3e+38, %v1209
        %v1626 = vsel %vm1546, 3e+38, %v1210
        %v1627 = vsel %vm1547, 3e+38, %v1211
        %v1628 = vsel %vm1548, 3e+38, %v1212
        %v1629 = vsel %vm1549, 3e+38, %v1213
        %v1630 = vsel %vm1550, 3e+38, %v1214
        %v1631 = vsel %vm1551, 3e+38, %v1215
        %v1632 = vsel %vm1552, 3e+38, %v1216
        %v1633 = vsel %vm1553, 3e+38, %v1217
        %v1634 = vsel %vm1554, 3e+38, %v1218
        %v1635 = vsel %vm1555, 3e+38, %v1219
        %v1636 = vsel %vm803, %v1620, inf
        %1637 = vmin.xlane.f32.xlu0 %v1636
        %v1638 = vpop.xlane.xlu0 %1637
        %v1639 = vsel %vm803, %v1621, inf
        %1640 = vmin.xlane.f32.xlu0 %v1639
        %v1641 = vpop.xlane.xlu0 %1640
        %v1642 = vsel %vm803, %v1622, inf
        %1643 = vmin.xlane.f32.xlu0 %v1642
        %v1644 = vpop.xlane.xlu0 %1643
        %v1645 = vsel %vm803, %v1623, inf
        %1646 = vmin.xlane.f32.xlu0 %v1645
        %v1647 = vpop.xlane.xlu0 %1646
        %v1648 = vsel %vm803, %v1624, inf
        %1649 = vmin.xlane.f32.xlu0 %v1648
        %v1650 = vpop.xlane.xlu0 %1649
        %v1651 = vsel %vm803, %v1625, inf
        %1652 = vmin.xlane.f32.xlu0 %v1651
        %v1653 = vpop.xlane.xlu0 %1652
        %v1654 = vsel %vm803, %v1626, inf
        %1655 = vmin.xlane.f32.xlu0 %v1654
        %v1656 = vpop.xlane.xlu0 %1655
        %v1657 = vsel %vm803, %v1627, inf
        %1658 = vmin.xlane.f32.xlu0 %v1657
        %v1659 = vpop.xlane.xlu0 %1658
        %v1660 = vsel %vm803, %v1628, inf
        %1661 = vmin.xlane.f32.xlu0 %v1660
        %v1662 = vpop.xlane.xlu0 %1661
        %v1663 = vsel %vm803, %v1629, inf
        %1664 = vmin.xlane.f32.xlu0 %v1663
        %v1665 = vpop.xlane.xlu0 %1664
        %v1666 = vsel %vm803, %v1630, inf
        %1667 = vmin.xlane.f32.xlu0 %v1666
        %v1668 = vpop.xlane.xlu0 %1667
        %v1669 = vsel %vm803, %v1631, inf
        %1670 = vmin.xlane.f32.xlu0 %v1669
        %v1671 = vpop.xlane.xlu0 %1670
        %v1672 = vsel %vm803, %v1632, inf
        %1673 = vmin.xlane.f32.xlu0 %v1672
        %v1674 = vpop.xlane.xlu0 %1673
        %v1675 = vsel %vm803, %v1633, inf
        %1676 = vmin.xlane.f32.xlu0 %v1675
        %v1677 = vpop.xlane.xlu0 %1676
        %v1678 = vsel %vm803, %v1634, inf
        %1679 = vmin.xlane.f32.xlu0 %v1678
        %v1680 = vpop.xlane.xlu0 %1679
        %v1681 = vsel %vm803, %v1635, inf
        %1682 = vmin.xlane.f32.xlu0 %v1681
        %v1683 = vpop.xlane.xlu0 %1682
        %vm1684 = vcmp.eq.f32.partialorder %v1620, %v1638
        %vm1685 = vcmp.eq.f32.partialorder %v1621, %v1641
        %vm1686 = vcmp.eq.f32.partialorder %v1622, %v1644
        %vm1687 = vcmp.eq.f32.partialorder %v1623, %v1647
        %vm1688 = vcmp.eq.f32.partialorder %v1624, %v1650
        %vm1689 = vcmp.eq.f32.partialorder %v1625, %v1653
        %vm1690 = vcmp.eq.f32.partialorder %v1626, %v1656
        %vm1691 = vcmp.eq.f32.partialorder %v1627, %v1659
        %vm1692 = vcmp.eq.f32.partialorder %v1628, %v1662
        %vm1693 = vcmp.eq.f32.partialorder %v1629, %v1665
        %vm1694 = vcmp.eq.f32.partialorder %v1630, %v1668
        %vm1695 = vcmp.eq.f32.partialorder %v1631, %v1671
        %vm1696 = vcmp.eq.f32.partialorder %v1632, %v1674
        %vm1697 = vcmp.eq.f32.partialorder %v1633, %v1677
        %vm1698 = vcmp.eq.f32.partialorder %v1634, %v1680
        %vm1699 = vcmp.eq.f32.partialorder %v1635, %v1683
        %v1700 = vsel %vm1684, %v802, 64
        %v1701 = vsel %vm1685, %v802, 64
        %v1702 = vsel %vm1686, %v802, 64
        %v1703 = vsel %vm1687, %v802, 64
        %v1704 = vsel %vm1688, %v802, 64
        %v1705 = vsel %vm1689, %v802, 64
        %v1706 = vsel %vm1690, %v802, 64
        %v1707 = vsel %vm1691, %v802, 64
        %v1708 = vsel %vm1692, %v802, 64
        %v1709 = vsel %vm1693, %v802, 64
        %v1710 = vsel %vm1694, %v802, 64
        %v1711 = vsel %vm1695, %v802, 64
        %v1712 = vsel %vm1696, %v802, 64
        %v1713 = vsel %vm1697, %v802, 64
        %v1714 = vsel %vm1698, %v802, 64
        %v1715 = vsel %vm1699, %v802, 64
        %v1716 = vsel %vm803, %v1700, 2147483647
        %v1717 = vand.u32 %v1716, 65535
        %v1718 = vshra.s32 %v1716, 16
        %v1719 = vcvt.s32.f32 %v1717
        %v1720 = vcvt.s32.f32 %v1718
        %1721 = vmin.xlane.f32.xlu0 %v1720
        %v1722 = vpop.xlane.xlu0 %1721
        %vm1723 = vcmp.eq.f32.partialorder %v1720, %v1722
        %v1724 = vsel %vm1723, %v1719, inf
        %1725 = vmin.xlane.f32.xlu0 %v1724
        %v1726 = vpop.xlane.xlu0 %1725
        %v1727 = vcvt.f32.s32 %v1726
        %v1728 = vcvt.f32.s32 %v1722
        %v1729 = vshll.u32 %v1728, 16
        %v1730 = vadd.s32 %v1729, %v1727
        %v1731 = vsel %vm803, %v1701, 2147483647
        %v1732 = vand.u32 %v1731, 65535
        %v1733 = vshra.s32 %v1731, 16
        %v1734 = vcvt.s32.f32 %v1732
        %v1735 = vcvt.s32.f32 %v1733
        %1736 = vmin.xlane.f32.xlu0 %v1735
        %v1737 = vpop.xlane.xlu0 %1736
        %vm1738 = vcmp.eq.f32.partialorder %v1735, %v1737
        %v1739 = vsel %vm1738, %v1734, inf
        %1740 = vmin.xlane.f32.xlu0 %v1739
        %v1741 = vpop.xlane.xlu0 %1740
        %v1742 = vcvt.f32.s32 %v1741
        %v1743 = vcvt.f32.s32 %v1737
        %v1744 = vshll.u32 %v1743, 16
        %v1745 = vadd.s32 %v1744, %v1742
        %v1746 = vsel %vm803, %v1702, 2147483647
        %v1747 = vand.u32 %v1746, 65535
        %v1748 = vshra.s32 %v1746, 16
        %v1749 = vcvt.s32.f32 %v1747
        %v1750 = vcvt.s32.f32 %v1748
        %1751 = vmin.xlane.f32.xlu0 %v1750
        %v1752 = vpop.xlane.xlu0 %1751
        %vm1753 = vcmp.eq.f32.partialorder %v1750, %v1752
        %v1754 = vsel %vm1753, %v1749, inf
        %1755 = vmin.xlane.f32.xlu0 %v1754
        %v1756 = vpop.xlane.xlu0 %1755
        %v1757 = vcvt.f32.s32 %v1756
        %v1758 = vcvt.f32.s32 %v1752
        %v1759 = vshll.u32 %v1758, 16
        %v1760 = vadd.s32 %v1759, %v1757
        %v1761 = vsel %vm803, %v1703, 2147483647
        %v1762 = vand.u32 %v1761, 65535
        %v1763 = vshra.s32 %v1761, 16
        %v1764 = vcvt.s32.f32 %v1762
        %v1765 = vcvt.s32.f32 %v1763
        %1766 = vmin.xlane.f32.xlu0 %v1765
        %v1767 = vpop.xlane.xlu0 %1766
        %vm1768 = vcmp.eq.f32.partialorder %v1765, %v1767
        %v1769 = vsel %vm1768, %v1764, inf
        %1770 = vmin.xlane.f32.xlu0 %v1769
        %v1771 = vpop.xlane.xlu0 %1770
        %v1772 = vcvt.f32.s32 %v1771
        %v1773 = vcvt.f32.s32 %v1767
        %v1774 = vshll.u32 %v1773, 16
        %v1775 = vadd.s32 %v1774, %v1772
        %v1776 = vsel %vm803, %v1704, 2147483647
        %v1777 = vand.u32 %v1776, 65535
        %v1778 = vshra.s32 %v1776, 16
        %v1779 = vcvt.s32.f32 %v1777
        %v1780 = vcvt.s32.f32 %v1778
        %1781 = vmin.xlane.f32.xlu0 %v1780
        %v1782 = vpop.xlane.xlu0 %1781
        %vm1783 = vcmp.eq.f32.partialorder %v1780, %v1782
        %v1784 = vsel %vm1783, %v1779, inf
        %1785 = vmin.xlane.f32.xlu0 %v1784
        %v1786 = vpop.xlane.xlu0 %1785
        %v1787 = vcvt.f32.s32 %v1786
        %v1788 = vcvt.f32.s32 %v1782
        %v1789 = vshll.u32 %v1788, 16
        %v1790 = vadd.s32 %v1789, %v1787
        %v1791 = vsel %vm803, %v1705, 2147483647
        %v1792 = vand.u32 %v1791, 65535
        %v1793 = vshra.s32 %v1791, 16
        %v1794 = vcvt.s32.f32 %v1792
        %v1795 = vcvt.s32.f32 %v1793
        %1796 = vmin.xlane.f32.xlu0 %v1795
        %v1797 = vpop.xlane.xlu0 %1796
        %vm1798 = vcmp.eq.f32.partialorder %v1795, %v1797
        %v1799 = vsel %vm1798, %v1794, inf
        %1800 = vmin.xlane.f32.xlu0 %v1799
        %v1801 = vpop.xlane.xlu0 %1800
        %v1802 = vcvt.f32.s32 %v1801
        %v1803 = vcvt.f32.s32 %v1797
        %v1804 = vshll.u32 %v1803, 16
        %v1805 = vadd.s32 %v1804, %v1802
        %v1806 = vsel %vm803, %v1706, 2147483647
        %v1807 = vand.u32 %v1806, 65535
        %v1808 = vshra.s32 %v1806, 16
        %v1809 = vcvt.s32.f32 %v1807
        %v1810 = vcvt.s32.f32 %v1808
        %1811 = vmin.xlane.f32.xlu0 %v1810
        %v1812 = vpop.xlane.xlu0 %1811
        %vm1813 = vcmp.eq.f32.partialorder %v1810, %v1812
        %v1814 = vsel %vm1813, %v1809, inf
        %1815 = vmin.xlane.f32.xlu0 %v1814
        %v1816 = vpop.xlane.xlu0 %1815
        %v1817 = vcvt.f32.s32 %v1816
        %v1818 = vcvt.f32.s32 %v1812
        %v1819 = vshll.u32 %v1818, 16
        %v1820 = vadd.s32 %v1819, %v1817
        %v1821 = vsel %vm803, %v1707, 2147483647
        %v1822 = vand.u32 %v1821, 65535
        %v1823 = vshra.s32 %v1821, 16
        %v1824 = vcvt.s32.f32 %v1822
        %v1825 = vcvt.s32.f32 %v1823
        %1826 = vmin.xlane.f32.xlu0 %v1825
        %v1827 = vpop.xlane.xlu0 %1826
        %vm1828 = vcmp.eq.f32.partialorder %v1825, %v1827
        %v1829 = vsel %vm1828, %v1824, inf
        %1830 = vmin.xlane.f32.xlu0 %v1829
        %v1831 = vpop.xlane.xlu0 %1830
        %v1832 = vcvt.f32.s32 %v1831
        %v1833 = vcvt.f32.s32 %v1827
        %v1834 = vshll.u32 %v1833, 16
        %v1835 = vadd.s32 %v1834, %v1832
        %v1836 = vsel %vm803, %v1708, 2147483647
        %v1837 = vand.u32 %v1836, 65535
        %v1838 = vshra.s32 %v1836, 16
        %v1839 = vcvt.s32.f32 %v1837
        %v1840 = vcvt.s32.f32 %v1838
        %1841 = vmin.xlane.f32.xlu0 %v1840
        %v1842 = vpop.xlane.xlu0 %1841
        %vm1843 = vcmp.eq.f32.partialorder %v1840, %v1842
        %v1844 = vsel %vm1843, %v1839, inf
        %1845 = vmin.xlane.f32.xlu0 %v1844
        %v1846 = vpop.xlane.xlu0 %1845
        %v1847 = vcvt.f32.s32 %v1846
        %v1848 = vcvt.f32.s32 %v1842
        %v1849 = vshll.u32 %v1848, 16
        %v1850 = vadd.s32 %v1849, %v1847
        %v1851 = vsel %vm803, %v1709, 2147483647
        %v1852 = vand.u32 %v1851, 65535
        %v1853 = vshra.s32 %v1851, 16
        %v1854 = vcvt.s32.f32 %v1852
        %v1855 = vcvt.s32.f32 %v1853
        %1856 = vmin.xlane.f32.xlu0 %v1855
        %v1857 = vpop.xlane.xlu0 %1856
        %vm1858 = vcmp.eq.f32.partialorder %v1855, %v1857
        %v1859 = vsel %vm1858, %v1854, inf
        %1860 = vmin.xlane.f32.xlu0 %v1859
        %v1861 = vpop.xlane.xlu0 %1860
        %v1862 = vcvt.f32.s32 %v1861
        %v1863 = vcvt.f32.s32 %v1857
        %v1864 = vshll.u32 %v1863, 16
        %v1865 = vadd.s32 %v1864, %v1862
        %v1866 = vsel %vm803, %v1710, 2147483647
        %v1867 = vand.u32 %v1866, 65535
        %v1868 = vshra.s32 %v1866, 16
        %v1869 = vcvt.s32.f32 %v1867
        %v1870 = vcvt.s32.f32 %v1868
        %1871 = vmin.xlane.f32.xlu0 %v1870
        %v1872 = vpop.xlane.xlu0 %1871
        %vm1873 = vcmp.eq.f32.partialorder %v1870, %v1872
        %v1874 = vsel %vm1873, %v1869, inf
        %1875 = vmin.xlane.f32.xlu0 %v1874
        %v1876 = vpop.xlane.xlu0 %1875
        %v1877 = vcvt.f32.s32 %v1876
        %v1878 = vcvt.f32.s32 %v1872
        %v1879 = vshll.u32 %v1878, 16
        %v1880 = vadd.s32 %v1879, %v1877
        %v1881 = vsel %vm803, %v1711, 2147483647
        %v1882 = vand.u32 %v1881, 65535
        %v1883 = vshra.s32 %v1881, 16
        %v1884 = vcvt.s32.f32 %v1882
        %v1885 = vcvt.s32.f32 %v1883
        %1886 = vmin.xlane.f32.xlu0 %v1885
        %v1887 = vpop.xlane.xlu0 %1886
        %vm1888 = vcmp.eq.f32.partialorder %v1885, %v1887
        %v1889 = vsel %vm1888, %v1884, inf
        %1890 = vmin.xlane.f32.xlu0 %v1889
        %v1891 = vpop.xlane.xlu0 %1890
        %v1892 = vcvt.f32.s32 %v1891
        %v1893 = vcvt.f32.s32 %v1887
        %v1894 = vshll.u32 %v1893, 16
        %v1895 = vadd.s32 %v1894, %v1892
        %v1896 = vsel %vm803, %v1712, 2147483647
        %v1897 = vand.u32 %v1896, 65535
        %v1898 = vshra.s32 %v1896, 16
        %v1899 = vcvt.s32.f32 %v1897
        %v1900 = vcvt.s32.f32 %v1898
        %1901 = vmin.xlane.f32.xlu0 %v1900
        %v1902 = vpop.xlane.xlu0 %1901
        %vm1903 = vcmp.eq.f32.partialorder %v1900, %v1902
        %v1904 = vsel %vm1903, %v1899, inf
        %1905 = vmin.xlane.f32.xlu0 %v1904
        %v1906 = vpop.xlane.xlu0 %1905
        %v1907 = vcvt.f32.s32 %v1906
        %v1908 = vcvt.f32.s32 %v1902
        %v1909 = vshll.u32 %v1908, 16
        %v1910 = vadd.s32 %v1909, %v1907
        %v1911 = vsel %vm803, %v1713, 2147483647
        %v1912 = vand.u32 %v1911, 65535
        %v1913 = vshra.s32 %v1911, 16
        %v1914 = vcvt.s32.f32 %v1912
        %v1915 = vcvt.s32.f32 %v1913
        %1916 = vmin.xlane.f32.xlu0 %v1915
        %v1917 = vpop.xlane.xlu0 %1916
        %vm1918 = vcmp.eq.f32.partialorder %v1915, %v1917
        %v1919 = vsel %vm1918, %v1914, inf
        %1920 = vmin.xlane.f32.xlu0 %v1919
        %v1921 = vpop.xlane.xlu0 %1920
        %v1922 = vcvt.f32.s32 %v1921
        %v1923 = vcvt.f32.s32 %v1917
        %v1924 = vshll.u32 %v1923, 16
        %v1925 = vadd.s32 %v1924, %v1922
        %v1926 = vsel %vm803, %v1714, 2147483647
        %v1927 = vand.u32 %v1926, 65535
        %v1928 = vshra.s32 %v1926, 16
        %v1929 = vcvt.s32.f32 %v1927
        %v1930 = vcvt.s32.f32 %v1928
        %1931 = vmin.xlane.f32.xlu0 %v1930
        %v1932 = vpop.xlane.xlu0 %1931
        %vm1933 = vcmp.eq.f32.partialorder %v1930, %v1932
        %v1934 = vsel %vm1933, %v1929, inf
        %1935 = vmin.xlane.f32.xlu0 %v1934
        %v1936 = vpop.xlane.xlu0 %1935
        %v1937 = vcvt.f32.s32 %v1936
        %v1938 = vcvt.f32.s32 %v1932
        %v1939 = vshll.u32 %v1938, 16
        %v1940 = vadd.s32 %v1939, %v1937
        %v1941 = vsel %vm803, %v1715, 2147483647
        %v1942 = vand.u32 %v1941, 65535
        %v1943 = vshra.s32 %v1941, 16
        %v1944 = vcvt.s32.f32 %v1942
        %v1945 = vcvt.s32.f32 %v1943
        %1946 = vmin.xlane.f32.xlu0 %v1945
        %v1947 = vpop.xlane.xlu0 %1946
        %vm1948 = vcmp.eq.f32.partialorder %v1945, %v1947
        %v1949 = vsel %vm1948, %v1944, inf
        %1950 = vmin.xlane.f32.xlu0 %v1949
        %v1951 = vpop.xlane.xlu0 %1950
        %v1952 = vcvt.f32.s32 %v1951
        %v1953 = vcvt.f32.s32 %v1947
        %v1954 = vshll.u32 %v1953, 16
        %v1955 = vadd.s32 %v1954, %v1952
        %vm1956 = vcmp.eq.s32.totalorder %v802, %v1730
        %vm1957 = vcmp.eq.s32.totalorder %v802, %v1745
        %vm1958 = vcmp.eq.s32.totalorder %v802, %v1760
        %vm1959 = vcmp.eq.s32.totalorder %v802, %v1775
        %vm1960 = vcmp.eq.s32.totalorder %v802, %v1790
        %vm1961 = vcmp.eq.s32.totalorder %v802, %v1805
        %vm1962 = vcmp.eq.s32.totalorder %v802, %v1820
        %vm1963 = vcmp.eq.s32.totalorder %v802, %v1835
        %vm1964 = vcmp.eq.s32.totalorder %v802, %v1850
        %vm1965 = vcmp.eq.s32.totalorder %v802, %v1865
        %vm1966 = vcmp.eq.s32.totalorder %v802, %v1880
        %vm1967 = vcmp.eq.s32.totalorder %v802, %v1895
        %vm1968 = vcmp.eq.s32.totalorder %v802, %v1910
        %vm1969 = vcmp.eq.s32.totalorder %v802, %v1925
        %vm1970 = vcmp.eq.s32.totalorder %v802, %v1940
        %vm1971 = vcmp.eq.s32.totalorder %v802, %v1955
        %v1972 = vadd.f32 %v1638, 1e-08
        %v1973 = vadd.f32 %v1641, 1e-08
        %v1974 = vadd.f32 %v1644, 1e-08
        %v1975 = vadd.f32 %v1647, 1e-08
        %v1976 = vadd.f32 %v1650, 1e-08
        %v1977 = vadd.f32 %v1653, 1e-08
        %v1978 = vadd.f32 %v1656, 1e-08
        %v1979 = vadd.f32 %v1659, 1e-08
        %v1980 = vadd.f32 %v1662, 1e-08
        %v1981 = vadd.f32 %v1665, 1e-08
        %v1982 = vadd.f32 %v1668, 1e-08
        %v1983 = vadd.f32 %v1671, 1e-08
        %v1984 = vadd.f32 %v1674, 1e-08
        %v1985 = vadd.f32 %v1677, 1e-08
        %v1986 = vadd.f32 %v1680, 1e-08
        %v1987 = vadd.f32 %v1683, 1e-08
        %v1988 = vrcp.pop %v1972
        %v1989 = vmul.f32 1.0, %v1988
        %v1990 = vrcp.pop %v1973
        %v1991 = vmul.f32 1.0, %v1990
        %v1992 = vrcp.pop %v1974
        %v1993 = vmul.f32 1.0, %v1992
        %v1994 = vrcp.pop %v1975
        %v1995 = vmul.f32 1.0, %v1994
        %v1996 = vrcp.pop %v1976
        %v1997 = vmul.f32 1.0, %v1996
        %v1998 = vrcp.pop %v1977
        %v1999 = vmul.f32 1.0, %v1998
        %v2000 = vrcp.pop %v1978
        %v2001 = vmul.f32 1.0, %v2000
        %v2002 = vrcp.pop %v1979
        %v2003 = vmul.f32 1.0, %v2002
        %v2004 = vrcp.pop %v1980
        %v2005 = vmul.f32 1.0, %v2004
        %v2006 = vrcp.pop %v1981
        %v2007 = vmul.f32 1.0, %v2006
        %v2008 = vrcp.pop %v1982
        %v2009 = vmul.f32 1.0, %v2008
        %v2010 = vrcp.pop %v1983
        %v2011 = vmul.f32 1.0, %v2010
        %v2012 = vrcp.pop %v1984
        %v2013 = vmul.f32 1.0, %v2012
        %v2014 = vrcp.pop %v1985
        %v2015 = vmul.f32 1.0, %v2014
        %v2016 = vrcp.pop %v1986
        %v2017 = vmul.f32 1.0, %v2016
        %v2018 = vrcp.pop %v1987
        %v2019 = vmul.f32 1.0, %v2018
        %v2020 = vsel %vm1956, %v1989, %v1604
        %v2021 = vsel %vm1957, %v1991, %v1605
        %v2022 = vsel %vm1958, %v1993, %v1606
        %v2023 = vsel %vm1959, %v1995, %v1607
        %v2024 = vsel %vm1960, %v1997, %v1608
        %v2025 = vsel %vm1961, %v1999, %v1609
        %v2026 = vsel %vm1962, %v2001, %v1610
        %v2027 = vsel %vm1963, %v2003, %v1611
        %v2028 = vsel %vm1964, %v2005, %v1612
        %v2029 = vsel %vm1965, %v2007, %v1613
        %v2030 = vsel %vm1966, %v2009, %v1614
        %v2031 = vsel %vm1967, %v2011, %v1615
        %v2032 = vsel %vm1968, %v2013, %v1616
        %v2033 = vsel %vm1969, %v2015, %v1617
        %v2034 = vsel %vm1970, %v2017, %v1618
        %v2035 = vsel %vm1971, %v2019, %v1619
        %v2036 = vsel %vm803, %v2020, 0.0
        %2037 = vadd.xlane.f32.xlu0 %v2036
        %v2038 = vpop.xlane.xlu0 %2037
        %v2039 = vsel %vm803, %v2021, 0.0
        %2040 = vadd.xlane.f32.xlu0 %v2039
        %v2041 = vpop.xlane.xlu0 %2040
        %v2042 = vsel %vm803, %v2022, 0.0
        %2043 = vadd.xlane.f32.xlu0 %v2042
        %v2044 = vpop.xlane.xlu0 %2043
        %v2045 = vsel %vm803, %v2023, 0.0
        %2046 = vadd.xlane.f32.xlu0 %v2045
        %v2047 = vpop.xlane.xlu0 %2046
        %v2048 = vsel %vm803, %v2024, 0.0
        %2049 = vadd.xlane.f32.xlu0 %v2048
        %v2050 = vpop.xlane.xlu0 %2049
        %v2051 = vsel %vm803, %v2025, 0.0
        %2052 = vadd.xlane.f32.xlu0 %v2051
        %v2053 = vpop.xlane.xlu0 %2052
        %v2054 = vsel %vm803, %v2026, 0.0
        %2055 = vadd.xlane.f32.xlu0 %v2054
        %v2056 = vpop.xlane.xlu0 %2055
        %v2057 = vsel %vm803, %v2027, 0.0
        %2058 = vadd.xlane.f32.xlu0 %v2057
        %v2059 = vpop.xlane.xlu0 %2058
        %v2060 = vsel %vm803, %v2028, 0.0
        %2061 = vadd.xlane.f32.xlu0 %v2060
        %v2062 = vpop.xlane.xlu0 %2061
        %v2063 = vsel %vm803, %v2029, 0.0
        %2064 = vadd.xlane.f32.xlu0 %v2063
        %v2065 = vpop.xlane.xlu0 %2064
        %v2066 = vsel %vm803, %v2030, 0.0
        %2067 = vadd.xlane.f32.xlu0 %v2066
        %v2068 = vpop.xlane.xlu0 %2067
        %v2069 = vsel %vm803, %v2031, 0.0
        %2070 = vadd.xlane.f32.xlu0 %v2069
        %v2071 = vpop.xlane.xlu0 %2070
        %v2072 = vsel %vm803, %v2032, 0.0
        %2073 = vadd.xlane.f32.xlu0 %v2072
        %v2074 = vpop.xlane.xlu0 %2073
        %v2075 = vsel %vm803, %v2033, 0.0
        %2076 = vadd.xlane.f32.xlu0 %v2075
        %v2077 = vpop.xlane.xlu0 %2076
        %v2078 = vsel %vm803, %v2034, 0.0
        %2079 = vadd.xlane.f32.xlu0 %v2078
        %v2080 = vpop.xlane.xlu0 %2079
        %v2081 = vsel %vm803, %v2035, 0.0
        %2082 = vadd.xlane.f32.xlu0 %v2081
        %v2083 = vpop.xlane.xlu0 %2082
        %v2084 = vrcp.pop %v2038
        %v2085 = vmul.f32 %v2020, %v2084
        %v2086 = vrcp.pop %v2041
        %v2087 = vmul.f32 %v2021, %v2086
        %v2088 = vrcp.pop %v2044
        %v2089 = vmul.f32 %v2022, %v2088
        %v2090 = vrcp.pop %v2047
        %v2091 = vmul.f32 %v2023, %v2090
        %v2092 = vrcp.pop %v2050
        %v2093 = vmul.f32 %v2024, %v2092
        %v2094 = vrcp.pop %v2053
        %v2095 = vmul.f32 %v2025, %v2094
        %v2096 = vrcp.pop %v2056
        %v2097 = vmul.f32 %v2026, %v2096
        %v2098 = vrcp.pop %v2059
        %v2099 = vmul.f32 %v2027, %v2098
        %v2100 = vrcp.pop %v2062
        %v2101 = vmul.f32 %v2028, %v2100
        %v2102 = vrcp.pop %v2065
        %v2103 = vmul.f32 %v2029, %v2102
        %v2104 = vrcp.pop %v2068
        %v2105 = vmul.f32 %v2030, %v2104
        %v2106 = vrcp.pop %v2071
        %v2107 = vmul.f32 %v2031, %v2106
        %v2108 = vrcp.pop %v2074
        %v2109 = vmul.f32 %v2032, %v2108
        %v2110 = vrcp.pop %v2077
        %v2111 = vmul.f32 %v2033, %v2110
        %v2112 = vrcp.pop %v2080
        %v2113 = vmul.f32 %v2034, %v2112
        %v2114 = vrcp.pop %v2083
        %v2115 = vmul.f32 %v2035, %v2114
        %v2116 = vpack.c.bf16 %v2087, %v2085
        %v2117 = vpack.c.bf16 %v2091, %v2089
        %v2118 = vpack.c.bf16 %v2095, %v2093
        %v2119 = vpack.c.bf16 %v2099, %v2097
        %v2120 = vpack.c.bf16 %v2103, %v2101
        %v2121 = vpack.c.bf16 %v2107, %v2105
        %v2122 = vpack.c.bf16 %v2111, %v2109
        %v2123 = vpack.c.bf16 %v2115, %v2113
        %v2124 = vld [vmem:[%s433] sm:$0xf]
        %v2125 = vld [vmem:[%s433 + $0x4] sm:$0xf]
        %v2126 = vld [vmem:[%s433 + $0x8] sm:$0xf]
        %v2127 = vld [vmem:[%s433 + $0xc] sm:$0xf]
        %v2128 = vld [vmem:[%s433 + $0x10] sm:$0xf]
        %v2129 = vld [vmem:[%s433 + $0x14] sm:$0xf]
        %v2130 = vld [vmem:[%s433 + $0x18] sm:$0xf]
        %v2131 = vld [vmem:[%s433 + $0x1c] sm:$0xf]
        %v2140 = vunpack.c.l.b16 %v2124
        %v2141 = vunpack.c.l.b16 %v2125
        %v2142 = vunpack.c.l.b16 %v2126
        %v2143 = vunpack.c.l.b16 %v2127
        %v2144 = vunpack.c.l.b16 %v2128
        %v2145 = vunpack.c.l.b16 %v2129
        %v2146 = vunpack.c.l.b16 %v2130
        %v2147 = vunpack.c.l.b16 %v2131
        %v2148 = vpack.c.b16 %v2141, %v2140
        %v2149 = vpack.c.b16 %v2143, %v2142
        %v2150 = vpack.c.b16 %v2145, %v2144
        %v2151 = vpack.c.b16 %v2147, %v2146
        %v2157 = vsel %vm803, %v2116, 0
        %v2160 = vsel %vm803, %v2117, 0
        %v2163 = vsel %vm803, %v2118, 0
        %v2166 = vsel %vm803, %v2119, 0
        %v2169 = vsel %vm803, %v2120, 0
        %v2172 = vsel %vm803, %v2121, 0
        %v2175 = vsel %vm803, %v2122, 0
        %v2178 = vsel %vm803, %v2123, 0
        %2180 = vmatprep.subr.bf16.mxu0 0
        %2181 = vmatpush1.bf16.msra.mxu0 0
        %2182 = vmatprep.subr.bf16.mxu0 0
        %2183 = vmatpush1.bf16.msra.mxu0 0
        %2184 = vmatprep.subr.bf16.mxu0 0
        %2185 = vmatpush1.bf16.msra.mxu0 0
        %2186 = vmatprep.subr.bf16.mxu0 0
        %2187 = vmatpush1.bf16.msra.mxu0 0
        %2188 = vmatprep.subr.bf16.mxu0 0
        %2189 = vmatpush1.bf16.msra.mxu0 %v2151
        %2190 = vmatprep.subr.bf16.mxu0 0
        %2191 = vmatpush1.bf16.msra.mxu0 %v2150
        %2192 = vmatprep.subr.bf16.mxu0 0
        %2193 = vmatpush1.bf16.msra.mxu0 %v2149
        %2194 = vmatprep.subr.bf16.mxu0 0
        %2195 = vmatpush1.bf16.msra.mxu0 %v2148
        %2196 = vmatprep.subr.bf16.mxu0 0
        %2197 = vmatpush2.bf16.msra.mxu0 0
        %2198 = vmatprep.subr.bf16.mxu0 0
        %2199 = vmatpush2.bf16.msra.mxu0 0
        %2200 = vmatprep.subr.bf16.mxu0 0
        %2201 = vmatpush2.bf16.msra.mxu0 0
        %2202 = vmatprep.subr.bf16.mxu0 0
        %2203 = vmatpush2.bf16.msra.mxu0 0
        %2204 = vmatprep.subr.bf16.mxu0 0
        %2205 = vmatpush2.bf16.msra.mxu0 0
        %2206 = vmatprep.subr.bf16.mxu0 0
        %2207 = vmatpush2.bf16.msra.mxu0 0
        %2208 = vmatprep.subr.bf16.mxu0 0
        %2209 = vmatpush2.bf16.msra.mxu0 0
        %2210 = vmatprep.subr.bf16.mxu0 0
        %2211 = vmatpush2.bf16.msra.mxu0 0
        %2212 = vmatprep.mubr.bf16.mxu0 0
        %2213 = vmatmul.mubr.bf16.gmra.mxu0 %v2157
        %v2214 = vpop.f32.mrf.mxu0
        %v2215 = vadd.f32 0.0, %v2214
        %v2216 = vpop.f32.mrf.mxu0
        %v2217 = vpop.f32.mrf.mxu0
        %v2218 = vadd.f32 0.0, %v2217
        %v2219 = vpop.f32.mrf.mxu0
        %2220 = vmatprep.mubr.bf16.mxu0 0
        %2221 = vmatmul.mubr.bf16.gmra.mxu0 %v2160
        %v2222 = vpop.f32.mrf.mxu0
        %v2223 = vadd.f32 0.0, %v2222
        %v2224 = vpop.f32.mrf.mxu0
        %v2225 = vpop.f32.mrf.mxu0
        %v2226 = vadd.f32 0.0, %v2225
        %v2227 = vpop.f32.mrf.mxu0
        %2228 = vmatprep.mubr.bf16.mxu0 0
        %2229 = vmatmul.mubr.bf16.gmra.mxu0 %v2163
        %v2230 = vpop.f32.mrf.mxu0
        %v2231 = vadd.f32 0.0, %v2230
        %v2232 = vpop.f32.mrf.mxu0
        %v2233 = vpop.f32.mrf.mxu0
        %v2234 = vadd.f32 0.0, %v2233
        %v2235 = vpop.f32.mrf.mxu0
        %2236 = vmatprep.mubr.bf16.mxu0 0
        %2237 = vmatmul.mubr.bf16.gmra.mxu0 %v2166
        %v2238 = vpop.f32.mrf.mxu0
        %v2239 = vadd.f32 0.0, %v2238
        %v2240 = vpop.f32.mrf.mxu0
        %v2241 = vpop.f32.mrf.mxu0
        %v2242 = vadd.f32 0.0, %v2241
        %v2243 = vpop.f32.mrf.mxu0
        %2244 = vmatprep.mubr.bf16.mxu0 0
        %2245 = vmatmul.mubr.bf16.gmra.mxu0 %v2169
        %v2246 = vpop.f32.mrf.mxu0
        %v2247 = vadd.f32 0.0, %v2246
        %v2248 = vpop.f32.mrf.mxu0
        %v2249 = vpop.f32.mrf.mxu0
        %v2250 = vadd.f32 0.0, %v2249
        %v2251 = vpop.f32.mrf.mxu0
        %2252 = vmatprep.mubr.bf16.mxu0 0
        %2253 = vmatmul.mubr.bf16.gmra.mxu0 %v2172
        %v2254 = vpop.f32.mrf.mxu0
        %v2255 = vadd.f32 0.0, %v2254
        %v2256 = vpop.f32.mrf.mxu0
        %v2257 = vpop.f32.mrf.mxu0
        %v2258 = vadd.f32 0.0, %v2257
        %v2259 = vpop.f32.mrf.mxu0
        %2260 = vmatprep.mubr.bf16.mxu0 0
        %2261 = vmatmul.mubr.bf16.gmra.mxu0 %v2175
        %v2262 = vpop.f32.mrf.mxu0
        %v2263 = vadd.f32 0.0, %v2262
        %v2264 = vpop.f32.mrf.mxu0
        %v2265 = vpop.f32.mrf.mxu0
        %v2266 = vadd.f32 0.0, %v2265
        %v2267 = vpop.f32.mrf.mxu0
        %2268 = vmatprep.mubr.bf16.mxu0 0
        %2269 = vmatmul.mubr.bf16.gmra.mxu0 %v2178
        %v2270 = vpop.f32.mrf.mxu0
        %v2271 = vadd.f32 0.0, %v2270
        %v2272 = vpop.f32.mrf.mxu0
        %v2273 = vpop.f32.mrf.mxu0
        %v2274 = vadd.f32 0.0, %v2273
        %v2275 = vpop.f32.mrf.mxu0
        %2276 = vdwg.mxu0
        %v2277 = vld [vmem:[%s427] sm:$0xf]
        %v2278 = vld [vmem:[%s427 + $0x4] sm:$0xf]
        %v2279 = vld [vmem:[%s427 + $0x8] sm:$0xf]
        %v2280 = vld [vmem:[%s427 + $0xc] sm:$0xf]
        %v2281 = vld [vmem:[%s427 + $0x10] sm:$0xf]
        %v2282 = vld [vmem:[%s427 + $0x14] sm:$0xf]
        %v2283 = vld [vmem:[%s427 + $0x18] sm:$0xf]
        %v2284 = vld [vmem:[%s427 + $0x1c] sm:$0xf]
        %v2285 = vld [vmem:[%s427 + $0x20] sm:$0xf]
        %v2286 = vld [vmem:[%s427 + $0x24] sm:$0xf]
        %v2287 = vld [vmem:[%s427 + $0x28] sm:$0xf]
        %v2288 = vld [vmem:[%s427 + $0x2c] sm:$0xf]
        %v2289 = vld [vmem:[%s427 + $0x30] sm:$0xf]
        %v2290 = vld [vmem:[%s427 + $0x34] sm:$0xf]
        %v2291 = vld [vmem:[%s427 + $0x38] sm:$0xf]
        %v2292 = vld [vmem:[%s427 + $0x3c] sm:$0xf]
        %v2293 = vld [vmem:[%s4] sm:$0xf]
        %v2294 = vld [vmem:[%s4 + $0x4] sm:$0xf]
        %v2295 = vld [vmem:[%s4 + $0x8] sm:$0xf]
        %v2296 = vld [vmem:[%s4 + $0xc] sm:$0xf]
        %v2297 = vpack.c.bf16 %v2218, %v2215
        %v2298 = vpack.c.bf16 %v2226, %v2223
        %v2299 = vpack.c.bf16 %v2234, %v2231
        %v2300 = vpack.c.bf16 %v2242, %v2239
        %v2301 = vpack.c.bf16 %v2250, %v2247
        %v2302 = vpack.c.bf16 %v2258, %v2255
        %v2303 = vpack.c.bf16 %v2266, %v2263
        %v2304 = vpack.c.bf16 %v2274, %v2271
        %v2305 = vld [vmem:[%s5] sm:$0xf]
        %v2306 = vld [vmem:[%s5 + $0x4] sm:$0xf]
        %v2307 = vld [vmem:[%s5 + $0x8] sm:$0xf]
        %v2308 = vld [vmem:[%s5 + $0xc] sm:$0xf]
        %v2313 = vunpack.c.l.b16 %v2305
        %v2314 = vunpack.c.l.b16 %v2306
        %v2315 = vunpack.c.l.b16 %v2307
        %v2316 = vunpack.c.l.b16 %v2308
        %v2317 = vpack.c.b16 %v2314, %v2313
        %v2318 = vpack.c.b16 %v2316, %v2315
        %vm2321 = vcmask 261120
        %v2323 = vsel %vm2321, %v2297, 0
        %v2326 = vsel %vm2321, %v2298, 0
        %v2329 = vsel %vm2321, %v2299, 0
        %v2332 = vsel %vm2321, %v2300, 0
        %v2335 = vsel %vm2321, %v2301, 0
        %v2338 = vsel %vm2321, %v2302, 0
        %v2341 = vsel %vm2321, %v2303, 0
        %v2344 = vsel %vm2321, %v2304, 0
        %2346 = vmatprep.subr.bf16.mxu0 0
        %2347 = vmatpush1.bf16.msra.mxu0 0
        %2348 = vmatprep.subr.bf16.mxu0 0
        %2349 = vmatpush1.bf16.msra.mxu0 0
        %2350 = vmatprep.subr.bf16.mxu0 0
        %2351 = vmatpush1.bf16.msra.mxu0 0
        %2352 = vmatprep.subr.bf16.mxu0 0
        %2353 = vmatpush1.bf16.msra.mxu0 0
        %2354 = vmatprep.subr.bf16.mxu0 0
        %2355 = vmatpush1.bf16.msra.mxu0 0
        %2356 = vmatprep.subr.bf16.mxu0 0
        %2357 = vmatpush1.bf16.msra.mxu0 0
        %2358 = vmatprep.subr.bf16.mxu0 0
        %2359 = vmatpush1.bf16.msra.mxu0 %v2318
        %2360 = vmatprep.subr.bf16.mxu0 0
        %2361 = vmatpush1.bf16.msra.mxu0 %v2317
        %2362 = vmatprep.subr.bf16.mxu0 0
        %2363 = vmatpush2.bf16.msra.mxu0 0
        %2364 = vmatprep.subr.bf16.mxu0 0
        %2365 = vmatpush2.bf16.msra.mxu0 0
        %2366 = vmatprep.subr.bf16.mxu0 0
        %2367 = vmatpush2.bf16.msra.mxu0 0
        %2368 = vmatprep.subr.bf16.mxu0 0
        %2369 = vmatpush2.bf16.msra.mxu0 0
        %2370 = vmatprep.subr.bf16.mxu0 0
        %2371 = vmatpush2.bf16.msra.mxu0 0
        %2372 = vmatprep.subr.bf16.mxu0 0
        %2373 = vmatpush2.bf16.msra.mxu0 0
        %2374 = vmatprep.subr.bf16.mxu0 0
        %2375 = vmatpush2.bf16.msra.mxu0 0
        %2376 = vmatprep.subr.bf16.mxu0 0
        %2377 = vmatpush2.bf16.msra.mxu0 0
        %2378 = vmatprep.mubr.bf16.mxu0 0
        %2379 = vmatmul.mubr.bf16.gmra.mxu0 %v2323
        %v2380 = vpop.f32.mrf.mxu0
        %v2381 = vadd.f32 0.0, %v2380
        %v2382 = vpop.f32.mrf.mxu0
        %v2383 = vpop.f32.mrf.mxu0
        %v2384 = vadd.f32 0.0, %v2383
        %v2385 = vpop.f32.mrf.mxu0
        %2386 = vmatprep.mubr.bf16.mxu0 0
        %2387 = vmatmul.mubr.bf16.gmra.mxu0 %v2326
        %v2388 = vpop.f32.mrf.mxu0
        %v2389 = vadd.f32 0.0, %v2388
        %v2390 = vpop.f32.mrf.mxu0
        %v2391 = vpop.f32.mrf.mxu0
        %v2392 = vadd.f32 0.0, %v2391
        %v2393 = vpop.f32.mrf.mxu0
        %2394 = vmatprep.mubr.bf16.mxu0 0
        %2395 = vmatmul.mubr.bf16.gmra.mxu0 %v2329
        %v2396 = vpop.f32.mrf.mxu0
        %v2397 = vadd.f32 0.0, %v2396
        %v2398 = vpop.f32.mrf.mxu0
        %v2399 = vpop.f32.mrf.mxu0
        %v2400 = vadd.f32 0.0, %v2399
        %v2401 = vpop.f32.mrf.mxu0
        %2402 = vmatprep.mubr.bf16.mxu0 0
        %2403 = vmatmul.mubr.bf16.gmra.mxu0 %v2332
        %v2404 = vpop.f32.mrf.mxu0
        %v2405 = vadd.f32 0.0, %v2404
        %v2406 = vpop.f32.mrf.mxu0
        %v2407 = vpop.f32.mrf.mxu0
        %v2408 = vadd.f32 0.0, %v2407
        %v2409 = vpop.f32.mrf.mxu0
        %2410 = vmatprep.mubr.bf16.mxu0 0
        %2411 = vmatmul.mubr.bf16.gmra.mxu0 %v2335
        %v2412 = vpop.f32.mrf.mxu0
        %v2413 = vadd.f32 0.0, %v2412
        %v2414 = vpop.f32.mrf.mxu0
        %v2415 = vpop.f32.mrf.mxu0
        %v2416 = vadd.f32 0.0, %v2415
        %v2417 = vpop.f32.mrf.mxu0
        %2418 = vmatprep.mubr.bf16.mxu0 0
        %2419 = vmatmul.mubr.bf16.gmra.mxu0 %v2338
        %v2420 = vpop.f32.mrf.mxu0
        %v2421 = vadd.f32 0.0, %v2420
        %v2422 = vpop.f32.mrf.mxu0
        %v2423 = vpop.f32.mrf.mxu0
        %v2424 = vadd.f32 0.0, %v2423
        %v2425 = vpop.f32.mrf.mxu0
        %2426 = vmatprep.mubr.bf16.mxu0 0
        %2427 = vmatmul.mubr.bf16.gmra.mxu0 %v2341
        %v2428 = vpop.f32.mrf.mxu0
        %v2429 = vadd.f32 0.0, %v2428
        %v2430 = vpop.f32.mrf.mxu0
        %v2431 = vpop.f32.mrf.mxu0
        %v2432 = vadd.f32 0.0, %v2431
        %v2433 = vpop.f32.mrf.mxu0
        %2434 = vmatprep.mubr.bf16.mxu0 0
        %2435 = vmatmul.mubr.bf16.gmra.mxu0 %v2344
        %v2436 = vpop.f32.mrf.mxu0
        %v2437 = vadd.f32 0.0, %v2436
        %v2438 = vpop.f32.mrf.mxu0
        %v2439 = vpop.f32.mrf.mxu0
        %v2440 = vadd.f32 0.0, %v2439
        %v2441 = vpop.f32.mrf.mxu0
        %2442 = vdwg.mxu0
        %v2459 = vunpack.c.l.b16 %v2277
        %v2460 = vunpack.c.l.b16 %v2278
        %v2461 = vunpack.c.l.b16 %v2279
        %v2462 = vunpack.c.l.b16 %v2280
        %v2463 = vunpack.c.l.b16 %v2281
        %v2464 = vunpack.c.l.b16 %v2282
        %v2465 = vunpack.c.l.b16 %v2283
        %v2466 = vunpack.c.l.b16 %v2284
        %v2467 = vunpack.c.l.b16 %v2285
        %v2468 = vunpack.c.l.b16 %v2286
        %v2469 = vunpack.c.l.b16 %v2287
        %v2470 = vunpack.c.l.b16 %v2288
        %v2471 = vunpack.c.l.b16 %v2289
        %v2472 = vunpack.c.l.b16 %v2290
        %v2473 = vunpack.c.l.b16 %v2291
        %v2474 = vunpack.c.l.b16 %v2292
        %v2475 = vpack.c.b16 %v2460, %v2459
        %v2476 = vpack.c.b16 %v2462, %v2461
        %v2477 = vpack.c.b16 %v2464, %v2463
        %v2478 = vpack.c.b16 %v2466, %v2465
        %v2479 = vpack.c.b16 %v2468, %v2467
        %v2480 = vpack.c.b16 %v2470, %v2469
        %v2481 = vpack.c.b16 %v2472, %v2471
        %v2482 = vpack.c.b16 %v2474, %v2473
        %v2487 = vunpack.c.l.b16 %v2293
        %v2488 = vunpack.c.l.b16 %v2294
        %v2489 = vunpack.c.l.b16 %v2295
        %v2490 = vunpack.c.l.b16 %v2296
        %v2491 = vpack.c.b16 %v2488, %v2487
        %v2492 = vpack.c.b16 %v2490, %v2489
        %v2496 = vsel %vm2321, %v2475, 0
        %v2499 = vsel %vm2321, %v2476, 0
        %v2502 = vsel %vm2321, %v2477, 0
        %v2505 = vsel %vm2321, %v2478, 0
        %v2508 = vsel %vm2321, %v2479, 0
        %v2511 = vsel %vm2321, %v2480, 0
        %v2514 = vsel %vm2321, %v2481, 0
        %v2517 = vsel %vm2321, %v2482, 0
        %2519 = vmatprep.subr.bf16.mxu0 0
        %2520 = vmatpush1.bf16.msra.mxu0 0
        %2521 = vmatprep.subr.bf16.mxu0 0
        %2522 = vmatpush1.bf16.msra.mxu0 0
        %2523 = vmatprep.subr.bf16.mxu0 0
        %2524 = vmatpush1.bf16.msra.mxu0 0
        %2525 = vmatprep.subr.bf16.mxu0 0
        %2526 = vmatpush1.bf16.msra.mxu0 0
        %2527 = vmatprep.subr.bf16.mxu0 0
        %2528 = vmatpush1.bf16.msra.mxu0 0
        %2529 = vmatprep.subr.bf16.mxu0 0
        %2530 = vmatpush1.bf16.msra.mxu0 0
        %2531 = vmatprep.subr.bf16.mxu0 0
        %2532 = vmatpush1.bf16.msra.mxu0 %v2492
        %2533 = vmatprep.subr.bf16.mxu0 0
        %2534 = vmatpush1.bf16.msra.mxu0 %v2491
        %2535 = vmatprep.subr.bf16.mxu0 0
        %2536 = vmatpush2.bf16.msra.mxu0 0
        %2537 = vmatprep.subr.bf16.mxu0 0
        %2538 = vmatpush2.bf16.msra.mxu0 0
        %2539 = vmatprep.subr.bf16.mxu0 0
        %2540 = vmatpush2.bf16.msra.mxu0 0
        %2541 = vmatprep.subr.bf16.mxu0 0
        %2542 = vmatpush2.bf16.msra.mxu0 0
        %2543 = vmatprep.subr.bf16.mxu0 0
        %2544 = vmatpush2.bf16.msra.mxu0 0
        %2545 = vmatprep.subr.bf16.mxu0 0
        %2546 = vmatpush2.bf16.msra.mxu0 0
        %2547 = vmatprep.subr.bf16.mxu0 0
        %2548 = vmatpush2.bf16.msra.mxu0 0
        %2549 = vmatprep.subr.bf16.mxu0 0
        %2550 = vmatpush2.bf16.msra.mxu0 0
        %2551 = vmatprep.mubr.bf16.mxu0 0
        %2552 = vmatmul.mubr.bf16.gmra.mxu0 %v2496
        %v2553 = vpop.f32.mrf.mxu0
        %v2554 = vadd.f32 %v2381, %v2553
        %v2555 = vpop.f32.mrf.mxu0
        %v2556 = vpop.f32.mrf.mxu0
        %v2557 = vadd.f32 %v2384, %v2556
        %v2558 = vpop.f32.mrf.mxu0
        %2559 = vmatprep.mubr.bf16.mxu0 0
        %2560 = vmatmul.mubr.bf16.gmra.mxu0 %v2499
        %v2561 = vpop.f32.mrf.mxu0
        %v2562 = vadd.f32 %v2389, %v2561
        %v2563 = vpop.f32.mrf.mxu0
        %v2564 = vpop.f32.mrf.mxu0
        %v2565 = vadd.f32 %v2392, %v2564
        %v2566 = vpop.f32.mrf.mxu0
        %2567 = vmatprep.mubr.bf16.mxu0 0
        %2568 = vmatmul.mubr.bf16.gmra.mxu0 %v2502
        %v2569 = vpop.f32.mrf.mxu0
        %v2570 = vadd.f32 %v2397, %v2569
        %v2571 = vpop.f32.mrf.mxu0
        %v2572 = vpop.f32.mrf.mxu0
        %v2573 = vadd.f32 %v2400, %v2572
        %v2574 = vpop.f32.mrf.mxu0
        %2575 = vmatprep.mubr.bf16.mxu0 0
        %2576 = vmatmul.mubr.bf16.gmra.mxu0 %v2505
        %v2577 = vpop.f32.mrf.mxu0
        %v2578 = vadd.f32 %v2405, %v2577
        %v2579 = vpop.f32.mrf.mxu0
        %v2580 = vpop.f32.mrf.mxu0
        %v2581 = vadd.f32 %v2408, %v2580
        %v2582 = vpop.f32.mrf.mxu0
        %2583 = vmatprep.mubr.bf16.mxu0 0
        %2584 = vmatmul.mubr.bf16.gmra.mxu0 %v2508
        %v2585 = vpop.f32.mrf.mxu0
        %v2586 = vadd.f32 %v2413, %v2585
        %v2587 = vpop.f32.mrf.mxu0
        %v2588 = vpop.f32.mrf.mxu0
        %v2589 = vadd.f32 %v2416, %v2588
        %v2590 = vpop.f32.mrf.mxu0
        %2591 = vmatprep.mubr.bf16.mxu0 0
        %2592 = vmatmul.mubr.bf16.gmra.mxu0 %v2511
        %v2593 = vpop.f32.mrf.mxu0
        %v2594 = vadd.f32 %v2421, %v2593
        %v2595 = vpop.f32.mrf.mxu0
        %v2596 = vpop.f32.mrf.mxu0
        %v2597 = vadd.f32 %v2424, %v2596
        %v2598 = vpop.f32.mrf.mxu0
        %2599 = vmatprep.mubr.bf16.mxu0 0
        %2600 = vmatmul.mubr.bf16.gmra.mxu0 %v2514
        %v2601 = vpop.f32.mrf.mxu0
        %v2602 = vadd.f32 %v2429, %v2601
        %v2603 = vpop.f32.mrf.mxu0
        %v2604 = vpop.f32.mrf.mxu0
        %v2605 = vadd.f32 %v2432, %v2604
        %v2606 = vpop.f32.mrf.mxu0
        %2607 = vmatprep.mubr.bf16.mxu0 0
        %2608 = vmatmul.mubr.bf16.gmra.mxu0 %v2517
        %v2609 = vpop.f32.mrf.mxu0
        %v2610 = vadd.f32 %v2437, %v2609
        %v2611 = vpop.f32.mrf.mxu0
        %v2612 = vpop.f32.mrf.mxu0
        %v2613 = vadd.f32 %v2440, %v2612
        %v2614 = vpop.f32.mrf.mxu0
        %2615 = vdwg.mxu0
        %v2616 = vld [vmem:[%s6] sm:$0x1]
        %v2618 = vlaneseq
        %v2619 = vshrl.u32 %v2618, 7
        %v2620 = vsub.s32 0, %v2619
        %v2621 = vrot.slane %v2616, %v2620
        %v2623 = vadd.f32 %v2554, %v2621
        %v2624 = vadd.f32 %v2557, %v2621
        %v2625 = vadd.f32 %v2562, %v2621
        %v2626 = vadd.f32 %v2565, %v2621
        %v2627 = vadd.f32 %v2570, %v2621
        %v2628 = vadd.f32 %v2573, %v2621
        %v2629 = vadd.f32 %v2578, %v2621
        %v2630 = vadd.f32 %v2581, %v2621
        %v2631 = vadd.f32 %v2586, %v2621
        %v2632 = vadd.f32 %v2589, %v2621
        %v2633 = vadd.f32 %v2594, %v2621
        %v2634 = vadd.f32 %v2597, %v2621
        %v2635 = vadd.f32 %v2602, %v2621
        %v2636 = vadd.f32 %v2605, %v2621
        %v2637 = vadd.f32 %v2610, %v2621
        %v2638 = vadd.f32 %v2613, %v2621
        %v2639 = vmax.f32 %v2623, 0.0
        %v2640 = vmax.f32 %v2624, 0.0
        %v2641 = vmax.f32 %v2625, 0.0
        %v2642 = vmax.f32 %v2626, 0.0
        %v2643 = vmax.f32 %v2627, 0.0
        %v2644 = vmax.f32 %v2628, 0.0
        %v2645 = vmax.f32 %v2629, 0.0
        %v2646 = vmax.f32 %v2630, 0.0
        %v2647 = vmax.f32 %v2631, 0.0
        %v2648 = vmax.f32 %v2632, 0.0
        %v2649 = vmax.f32 %v2633, 0.0
        %v2650 = vmax.f32 %v2634, 0.0
        %v2651 = vmax.f32 %v2635, 0.0
        %v2652 = vmax.f32 %v2636, 0.0
        %v2653 = vmax.f32 %v2637, 0.0
        %v2654 = vmax.f32 %v2638, 0.0
        %v2655 = vpack.c.bf16 %v2640, %v2639
        %v2656 = vpack.c.bf16 %v2642, %v2641
        %v2657 = vpack.c.bf16 %v2644, %v2643
        %v2658 = vpack.c.bf16 %v2646, %v2645
        %v2659 = vpack.c.bf16 %v2648, %v2647
        %v2660 = vpack.c.bf16 %v2650, %v2649
        %v2661 = vpack.c.bf16 %v2652, %v2651
        %v2662 = vpack.c.bf16 %v2654, %v2653
        %v2663 = vld [vmem:[%s7] sm:$0xf]
        %v2664 = vld [vmem:[%s7 + $0x4] sm:$0xf]
        %v2665 = vld [vmem:[%s7 + $0x8] sm:$0xf]
        %v2666 = vld [vmem:[%s7 + $0xc] sm:$0xf]
        %v2667 = vld [vmem:[%s7 + $0x10] sm:$0xf]
        %v2668 = vld [vmem:[%s7 + $0x14] sm:$0xf]
        %v2669 = vld [vmem:[%s7 + $0x18] sm:$0xf]
        %v2670 = vld [vmem:[%s7 + $0x1c] sm:$0xf]
        %v2671 = vld [vmem:[%s7 + $0x20] sm:$0xf]
        %v2672 = vld [vmem:[%s7 + $0x24] sm:$0xf]
        %v2673 = vld [vmem:[%s7 + $0x28] sm:$0xf]
        %v2674 = vld [vmem:[%s7 + $0x2c] sm:$0xf]
        %v2675 = vld [vmem:[%s7 + $0x30] sm:$0xf]
        %v2676 = vld [vmem:[%s7 + $0x34] sm:$0xf]
        %v2677 = vld [vmem:[%s7 + $0x38] sm:$0xf]
        %v2678 = vld [vmem:[%s7 + $0x3c] sm:$0xf]
        %v2679 = vld [vmem:[%s8] sm:$0x1]
        %v2681 = vlaneseq
        %v2682 = vshrl.u32 %v2681, 7
        %v2683 = vsub.s32 0, %v2682
        %v2684 = vrot.slane %v2679, %v2683
        %v2702 = vunpack.c.l.b16 %v2663
        %v2703 = vunpack.c.l.b16 %v2664
        %v2704 = vunpack.c.l.b16 %v2665
        %v2705 = vunpack.c.l.b16 %v2666
        %v2706 = vunpack.c.l.b16 %v2667
        %v2707 = vunpack.c.l.b16 %v2668
        %v2708 = vunpack.c.l.b16 %v2669
        %v2709 = vunpack.c.l.b16 %v2670
        %v2710 = vunpack.c.l.b16 %v2671
        %v2711 = vunpack.c.l.b16 %v2672
        %v2712 = vunpack.c.l.b16 %v2673
        %v2713 = vunpack.c.l.b16 %v2674
        %v2714 = vunpack.c.l.b16 %v2675
        %v2715 = vunpack.c.l.b16 %v2676
        %v2716 = vunpack.c.l.b16 %v2677
        %v2717 = vunpack.c.l.b16 %v2678
        %v2718 = vpack.c.b16 %v2703, %v2702
        %v2719 = vpack.c.b16 %v2705, %v2704
        %v2720 = vpack.c.b16 %v2707, %v2706
        %v2721 = vpack.c.b16 %v2709, %v2708
        %v2722 = vpack.c.b16 %v2711, %v2710
        %v2723 = vpack.c.b16 %v2713, %v2712
        %v2724 = vpack.c.b16 %v2715, %v2714
        %v2725 = vpack.c.b16 %v2717, %v2716
        %2734 = vmatprep.subr.bf16.mxu0 0
        %2735 = vmatpush1.bf16.msra.mxu0 %v2725
        %2736 = vmatprep.subr.bf16.mxu0 0
        %2737 = vmatpush1.bf16.msra.mxu0 %v2724
        %2738 = vmatprep.subr.bf16.mxu0 0
        %2739 = vmatpush1.bf16.msra.mxu0 %v2723
        %2740 = vmatprep.subr.bf16.mxu0 0
        %2741 = vmatpush1.bf16.msra.mxu0 %v2722
        %2742 = vmatprep.subr.bf16.mxu0 0
        %2743 = vmatpush1.bf16.msra.mxu0 %v2721
        %2744 = vmatprep.subr.bf16.mxu0 0
        %2745 = vmatpush1.bf16.msra.mxu0 %v2720
        %2746 = vmatprep.subr.bf16.mxu0 0
        %2747 = vmatpush1.bf16.msra.mxu0 %v2719
        %2748 = vmatprep.subr.bf16.mxu0 0
        %2749 = vmatpush1.bf16.msra.mxu0 %v2718
        %2750 = vmatprep.subr.bf16.mxu0 0
        %2751 = vmatpush2.bf16.msra.mxu0 0
        %2752 = vmatprep.subr.bf16.mxu0 0
        %2753 = vmatpush2.bf16.msra.mxu0 0
        %2754 = vmatprep.subr.bf16.mxu0 0
        %2755 = vmatpush2.bf16.msra.mxu0 0
        %2756 = vmatprep.subr.bf16.mxu0 0
        %2757 = vmatpush2.bf16.msra.mxu0 0
        %2758 = vmatprep.subr.bf16.mxu0 0
        %2759 = vmatpush2.bf16.msra.mxu0 0
        %2760 = vmatprep.subr.bf16.mxu0 0
        %2761 = vmatpush2.bf16.msra.mxu0 0
        %2762 = vmatprep.subr.bf16.mxu0 0
        %2763 = vmatpush2.bf16.msra.mxu0 0
        %2764 = vmatprep.subr.bf16.mxu0 0
        %2765 = vmatpush2.bf16.msra.mxu0 0
        %2766 = vmatprep.mubr.bf16.mxu0 0
        %2767 = vmatmul.mubr.bf16.gmra.mxu0 %v2655
        %v2768 = vpop.f32.mrf.mxu0
        %v2769 = vadd.f32 %v2684, %v2768
        %v2770 = vpop.f32.mrf.mxu0
        %v2771 = vpop.f32.mrf.mxu0
        %v2772 = vadd.f32 %v2684, %v2771
        %v2773 = vpop.f32.mrf.mxu0
        %2774 = vmatprep.mubr.bf16.mxu0 0
        %2775 = vmatmul.mubr.bf16.gmra.mxu0 %v2656
        %v2776 = vpop.f32.mrf.mxu0
        %v2777 = vadd.f32 %v2684, %v2776
        %v2778 = vpop.f32.mrf.mxu0
        %v2779 = vpop.f32.mrf.mxu0
        %v2780 = vadd.f32 %v2684, %v2779
        %v2781 = vpop.f32.mrf.mxu0
        %2782 = vmatprep.mubr.bf16.mxu0 0
        %2783 = vmatmul.mubr.bf16.gmra.mxu0 %v2657
        %v2784 = vpop.f32.mrf.mxu0
        %v2785 = vadd.f32 %v2684, %v2784
        %v2786 = vpop.f32.mrf.mxu0
        %v2787 = vpop.f32.mrf.mxu0
        %v2788 = vadd.f32 %v2684, %v2787
        %v2789 = vpop.f32.mrf.mxu0
        %2790 = vmatprep.mubr.bf16.mxu0 0
        %2791 = vmatmul.mubr.bf16.gmra.mxu0 %v2658
        %v2792 = vpop.f32.mrf.mxu0
        %v2793 = vadd.f32 %v2684, %v2792
        %v2794 = vpop.f32.mrf.mxu0
        %v2795 = vpop.f32.mrf.mxu0
        %v2796 = vadd.f32 %v2684, %v2795
        %v2797 = vpop.f32.mrf.mxu0
        %2798 = vmatprep.mubr.bf16.mxu0 0
        %2799 = vmatmul.mubr.bf16.gmra.mxu0 %v2659
        %v2800 = vpop.f32.mrf.mxu0
        %v2801 = vadd.f32 %v2684, %v2800
        %v2802 = vpop.f32.mrf.mxu0
        %v2803 = vpop.f32.mrf.mxu0
        %v2804 = vadd.f32 %v2684, %v2803
        %v2805 = vpop.f32.mrf.mxu0
        %2806 = vmatprep.mubr.bf16.mxu0 0
        %2807 = vmatmul.mubr.bf16.gmra.mxu0 %v2660
        %v2808 = vpop.f32.mrf.mxu0
        %v2809 = vadd.f32 %v2684, %v2808
        %v2810 = vpop.f32.mrf.mxu0
        %v2811 = vpop.f32.mrf.mxu0
        %v2812 = vadd.f32 %v2684, %v2811
        %v2813 = vpop.f32.mrf.mxu0
        %2814 = vmatprep.mubr.bf16.mxu0 0
        %2815 = vmatmul.mubr.bf16.gmra.mxu0 %v2661
        %v2816 = vpop.f32.mrf.mxu0
        %v2817 = vadd.f32 %v2684, %v2816
        %v2818 = vpop.f32.mrf.mxu0
        %v2819 = vpop.f32.mrf.mxu0
        %v2820 = vadd.f32 %v2684, %v2819
        %v2821 = vpop.f32.mrf.mxu0
        %2822 = vmatprep.mubr.bf16.mxu0 0
        %2823 = vmatmul.mubr.bf16.gmra.mxu0 %v2662
        %v2824 = vpop.f32.mrf.mxu0
        %v2825 = vadd.f32 %v2684, %v2824
        %v2826 = vpop.f32.mrf.mxu0
        %v2827 = vpop.f32.mrf.mxu0
        %v2828 = vadd.f32 %v2684, %v2827
        %v2829 = vpop.f32.mrf.mxu0
        %2830 = vdwg.mxu0
        %v2831 = vmax.f32 %v2769, 0.0
        %v2832 = vmax.f32 %v2772, 0.0
        %v2833 = vmax.f32 %v2777, 0.0
        %v2834 = vmax.f32 %v2780, 0.0
        %v2835 = vmax.f32 %v2785, 0.0
        %v2836 = vmax.f32 %v2788, 0.0
        %v2837 = vmax.f32 %v2793, 0.0
        %v2838 = vmax.f32 %v2796, 0.0
        %v2839 = vmax.f32 %v2801, 0.0
        %v2840 = vmax.f32 %v2804, 0.0
        %v2841 = vmax.f32 %v2809, 0.0
        %v2842 = vmax.f32 %v2812, 0.0
        %v2843 = vmax.f32 %v2817, 0.0
        %v2844 = vmax.f32 %v2820, 0.0
        %v2845 = vmax.f32 %v2825, 0.0
        %v2846 = vmax.f32 %v2828, 0.0
        %v2847 = vpack.c.bf16 %v2832, %v2831
        %v2848 = vpack.c.bf16 %v2834, %v2833
        %v2849 = vpack.c.bf16 %v2836, %v2835
        %v2850 = vpack.c.bf16 %v2838, %v2837
        %v2851 = vpack.c.bf16 %v2840, %v2839
        %v2852 = vpack.c.bf16 %v2842, %v2841
        %v2853 = vpack.c.bf16 %v2844, %v2843
        %v2854 = vpack.c.bf16 %v2846, %v2845
        %v2863 = vunpack.c.l.b16 %v2847
        %v2864 = vunpack.c.h.b16 %v2847
        %v2865 = vunpack.c.l.b16 %v2848
        %v2866 = vunpack.c.h.b16 %v2848
        %v2867 = vunpack.c.l.b16 %v2849
        %v2868 = vunpack.c.h.b16 %v2849
        %v2869 = vunpack.c.l.b16 %v2850
        %v2870 = vunpack.c.h.b16 %v2850
        %v2871 = vunpack.c.l.b16 %v2851
        %v2872 = vunpack.c.h.b16 %v2851
        %v2873 = vunpack.c.l.b16 %v2852
        %v2874 = vunpack.c.h.b16 %v2852
        %v2875 = vunpack.c.l.b16 %v2853
        %v2876 = vunpack.c.h.b16 %v2853
        %v2877 = vunpack.c.l.b16 %v2854
        %v2878 = vunpack.c.h.b16 %v2854
        %v2879 = vpack.c.b16 %v2863, %v2863
        %v2880 = vpack.c.b16 %v2864, %v2864
        %v2881 = vpack.c.b16 %v2865, %v2865
        %v2882 = vpack.c.b16 %v2866, %v2866
        %v2883 = vpack.c.b16 %v2867, %v2867
        %v2884 = vpack.c.b16 %v2868, %v2868
        %v2885 = vpack.c.b16 %v2869, %v2869
        %v2886 = vpack.c.b16 %v2870, %v2870
        %v2887 = vpack.c.b16 %v2871, %v2871
        %v2888 = vpack.c.b16 %v2872, %v2872
        %v2889 = vpack.c.b16 %v2873, %v2873
        %v2890 = vpack.c.b16 %v2874, %v2874
        %v2891 = vpack.c.b16 %v2875, %v2875
        %v2892 = vpack.c.b16 %v2876, %v2876
        %v2893 = vpack.c.b16 %v2877, %v2877
        %v2894 = vpack.c.b16 %v2878, %v2878
        %2911 = vst [vmem:[%s404] sm:$0xf] %v2879
        %2912 = vst [vmem:[%s404 + $0x4] sm:$0xf] %v2880
        %2913 = vst [vmem:[%s404 + $0x8] sm:$0xf] %v2881
        %2914 = vst [vmem:[%s404 + $0xc] sm:$0xf] %v2882
        %2915 = vst [vmem:[%s404 + $0x10] sm:$0xf] %v2883
        %2916 = vst [vmem:[%s404 + $0x14] sm:$0xf] %v2884
        %2917 = vst [vmem:[%s404 + $0x18] sm:$0xf] %v2885
        %2918 = vst [vmem:[%s404 + $0x1c] sm:$0xf] %v2886
        %2919 = vst [vmem:[%s404 + $0x20] sm:$0xf] %v2887
        %2920 = vst [vmem:[%s404 + $0x24] sm:$0xf] %v2888
        %2921 = vst [vmem:[%s404 + $0x28] sm:$0xf] %v2889
        %2922 = vst [vmem:[%s404 + $0x2c] sm:$0xf] %v2890
        %2923 = vst [vmem:[%s404 + $0x30] sm:$0xf] %v2891
        %2924 = vst [vmem:[%s404 + $0x34] sm:$0xf] %v2892
        %2925 = vst [vmem:[%s404 + $0x38] sm:$0xf] %v2893
        %2926 = vst [vmem:[%s404 + $0x3c] sm:$0xf] %v2894
        %s2927 = sand.u32 %s258, 1
        %s2928 = scalar_lea.sflag [#allocation3], %s2927
        %s2929 = sand.u32 %s258, 1
        %s2930 = smul.addr %s2929, 64
        %s2931 = scalar_lea.vmem [#allocation2], %s2930
        // Predicated region
        $region57: #{tpu_custom_call.1} parent=55 // pred_check
          %p2932 = pneg %p268
        $region58: #{tpu_custom_call.1} parent=55 // pred_check_branch
          %2934 = sbr.rel (%p2932) target = $region60
        $region59: #{tpu_custom_call.1} parent=55 // pred_region
          %s2935 = smul.u32 16, %s28
          %s2937 = ssub.s32 1024, 1024
          %2938 = vsyncadd %s2928, %s2937
          %s2939 = smul.addr %s27, 32
          %s2940 = sadd.s32 %s2935, %s2939
          %s2941 = smul.addr %s2940, 64
          %s2942 = scalar_lea.hbm %s9, %s2941
          %s2943 = sshll.u32 %s2931, 4
          %s2944 = int_to_ptr.vmem [resolvable:$true] %s2943
          %2949 = dma.vmem_to_hbm [thread:$0]  %s2944, 1024, %s2942, %s2928, 64, 64, 4
        $region60: #{tpu_custom_call.1} parent=55 // pred_fallthru
          _
      $region56: #{tpu_custom_call.1} parent=5 // pred_fallthru
        _
      %p2950 = scmp.le.s32.totalorder 2, %s18
      // Predicated region
      $region61: #{tpu_custom_call.1} parent=5 // pred_check
        %p2951 = pneg %p2950
      $region62: #{tpu_custom_call.1} parent=5 // pred_check_branch
        %2953 = sbr.rel (%p2951) target = $region64
      $region63: #{tpu_custom_call.1} parent=5 // pred_region
        %s2954 = ssub.s32 %s18, 2
        // Predicated region
        $region65: #{tpu_custom_call.1} parent=63 // pred_check
          %p2955 = pneg %p274
        $region66: #{tpu_custom_call.1} parent=63 // pred_check_branch
          %2957 = sbr.rel (%p2955) target = $region68
        $region67: #{tpu_custom_call.1} parent=63 // pred_region
          %s2958 = sand.u32 %s259, 1
          %s2959 = scalar_lea.sflag [#allocation3], %s2958
          %s2960 = sand.u32 %s259, 1
          %s2961 = smul.addr %s2960, 64
          %s2962 = scalar_lea.vmem [#allocation2], %s2961
          %2963 = dma.done %s2959, 1024
        $region68: #{tpu_custom_call.1} parent=63 // pred_fallthru
          _
      $region64: #{tpu_custom_call.1} parent=5 // pred_fallthru
        _
    $region6: #{tpu_custom_call.1} parent=1 // loop_footer
      %s22 = sadd.s32 1, %s18
    $region7: #{tpu_custom_call.1} parent=1 // loop_footer_branch
      %17 = sbr.rel target = $region3
    $region8: #{tpu_custom_call.1} parent=1 // loop_exit
      _
    %2964 = vsyncpa [#allocation3], 1
    %s2965 = scalar_lea.sflag [#allocation3], 1
    %2966 = vsyncpa %s2965, 1

</llo_original>
